<compile_context>
chip_gen: v6e
topology: v6e:2x2x1
jax: 0.10.0
libtpu: 0.0.40
codegen_flags: <defaults>
</compile_context>

<pallas_src>
import functools

import jax
import jax.numpy as jnp
from jax.experimental import pallas as pl
from jax.experimental.pallas import tpu as pltpu

# ---- model hyper-parameters (small, consistent with the module) -------------
B = 2          # batch
T = 8          # num_tokens  (<= block_size)
D_IN = 32      # d_in
D_OUT = 32     # d_out
NUM_HEADS = 4
HEAD_DIM = D_OUT // NUM_HEADS
BLOCK_SIZE = T  # causal mask size


def _mha_kernel(x_ref, wqkv_ref, wo_ref, bo_ref, o_ref,
                *, batch, seq, num_heads, head_dim, d_out):
    # x_ref:    (B*T, d_in)      VMEM, f32
    # wqkv_ref: (d_in, 3*d_out)  VMEM, bf16 (fused [Wq | Wk | Wv], precomputed)
    # wo_ref:   (d_out, d_out)   VMEM, f32
    # bo_ref:   (1, d_out)       VMEM, f32
    # o_ref:    (B*T, d_out)     VMEM, f32 (lane-dense 2-D output slab)

    # Fused QKV projection: bf16 MXU operands, f32 accumulate/output.
    x_bf = x_ref[...].astype(jnp.bfloat16)                      # (B*T, d_in)
    qkv = jnp.dot(x_bf, wqkv_ref[...],
                  preferred_element_type=jnp.float32)           # (B*T, 3*d_out) f32

    inv_scale = jnp.float32(1.0 / float(head_dim) ** 0.5)

    # Causal additive mask (T, T), hoisted out of the head loop.
    row = jax.lax.broadcasted_iota(jnp.int32, (seq, seq), 0)    # query index
    col = jax.lax.broadcasted_iota(jnp.int32, (seq, seq), 1)    # key index
    neg_mask = jnp.where(col > row, jnp.float32(-1e30), jnp.float32(0.0))

    bias = bo_ref[...]                                          # (1, d_out) f32

    # Statically unrolled per-batch / per-head 2-D attention.  The output
    # projection is accumulated per head so the (T, d_out) context vector is
    # never concatenated (no XLU shuffles, bounded vreg live ranges).
    for b in range(batch):
        r0 = b * seq                                            # sublane-aligned (seq=8)
        out_b = jnp.zeros((seq, d_out), jnp.float32)
        for h in range(num_heads):
            c0 = h * head_dim
            q_h = qkv[r0:r0 + seq, c0:c0 + head_dim].astype(jnp.bfloat16)
            k_h = qkv[r0:r0 + seq, d_out + c0:d_out + c0 + head_dim].astype(jnp.bfloat16)
            v_h = qkv[r0:r0 + seq, 2 * d_out + c0:2 * d_out + c0 + head_dim].astype(jnp.bfloat16)

            # scores = q_h @ k_h.T  (contract the head dim directly), f32 result.
            s = jax.lax.dot_general(
                q_h, k_h, (((1,), (1,)), ((), ())),
                preferred_element_type=jnp.float32)             # (T, T)
            s = s * inv_scale + neg_mask

            # softmax over keys in f32; reciprocal on the EUP (separate slot).
            m = jnp.max(s, axis=-1, keepdims=True)
            e = jnp.exp(s - m)
            denom = jnp.sum(e, axis=-1, keepdims=True)
            attn = e * pl.reciprocal(denom, approx=True)        # (T, T) f32

            ctx_h = jnp.dot(attn.astype(jnp.bfloat16), v_h,
                            preferred_element_type=jnp.float32)  # (T, hd) f32

            # Per-head output projection accumulate: ctx never materializes.
            wo_h = wo_ref[c0:c0 + head_dim, :].astype(jnp.bfloat16)   # (hd, d_out)
            out_b = out_b + jnp.dot(ctx_h.astype(jnp.bfloat16), wo_h,
                                    preferred_element_type=jnp.float32)

        o_ref[r0:r0 + seq, :] = (out_b + bias).astype(o_ref.dtype)


def fuse_attention_params(wq, wk, wv, wo, bo):
    """One-time parameter prep (hoisted out of the per-call hot path).

    Returns the fused QKV weight in bf16, the f32 output-projection weight and
    the bias as a (1, d_out) row vector.
    """
    wqkv = jnp.concatenate([wq, wk, wv], axis=1).astype(jnp.bfloat16)  # (d_in, 3*d_out)
    return wqkv, wo.astype(jnp.float32), bo.reshape(1, -1).astype(jnp.float32)


@functools.partial(jax.jit, static_argnames=("num_heads",))
def multi_head_attention(x, wqkv, wo, bo2, *, num_heads):
    """x: (B, T, d_in) f32; wqkv: (d_in, 3*d_out) bf16; wo: (d_out, d_out) f32;
    bo2: (1, d_out) f32."""
    b, t, d_in = x.shape
    d_out = wo.shape[0]
    head_dim = d_out // num_heads

    x_flat = x.reshape(b * t, d_in)                  # fill 16 sublanes per matmul

    kernel = functools.partial(_mha_kernel, batch=b, seq=t,
                               num_heads=num_heads, head_dim=head_dim,
                               d_out=d_out)

    # Single-program grid: everything fits trivially in VMEM (~12 KB resident),
    # so the per-grid-step overhead is paid exactly once.  At this size the
    # kernel is fixed-overhead bound; the right lever for more speed is fusing
    # more surrounding work (residual/LN/FFN) into the same pallas_call, or a
    # parallel batch axis once per-core work reaches a few microseconds (v7x).
    out_flat = pl.pallas_call(
        kernel,
        out_shape=jax.ShapeDtypeStruct((b * t, d_out), x.dtype),
        grid_spec=pltpu.PrefetchScalarGridSpec(
            num_scalar_prefetch=0,
            grid=(1,),
            in_specs=[
                pl.BlockSpec((b * t, d_in), lambda i: (0, 0)),
                pl.BlockSpec((d_in, 3 * d_out), lambda i: (0, 0)),
                pl.BlockSpec((d_out, d_out), lambda i: (0, 0)),
                pl.BlockSpec((1, d_out), lambda i: (0, 0)),
            ],
            out_specs=pl.BlockSpec((b * t, d_out), lambda i: (0, 0)),
        ),
        compiler_params=pltpu.CompilerParams(
            dimension_semantics=("arbitrary",)),
    )(x_flat, wqkv, wo, bo2)

    return out_flat.reshape(b, t, d_out)


def _reference(x, wq, wk, wv, wo, bo, num_heads):
    b, t, d_in = x.shape
    d_out = wq.shape[1]
    hd = d_out // num_heads
    q = (x @ wq).reshape(b, t, num_heads, hd).transpose(0, 2, 1, 3)
    k = (x @ wk).reshape(b, t, num_heads, hd).transpose(0, 2, 1, 3)
    v = (x @ wv).reshape(b, t, num_heads, hd).transpose(0, 2, 1, 3)
    scores = jnp.einsum('bhqd,bhkd->bhqk', q, k) / jnp.sqrt(jnp.float32(hd))
    mask = jnp.triu(jnp.ones((t, t), dtype=bool), k=1)
    scores = jnp.where(mask[None, None], -jnp.inf, scores)
    attn = jax.nn.softmax(scores, axis=-1)
    ctx = jnp.einsum('bhqk,bhkd->bhqd', attn, v).transpose(0, 2, 1, 3).reshape(b, t, d_out)
    return ctx @ wo + bo


if __name__ == "__main__":
    key = jax.random.PRNGKey(0)
    kx, kq, kk, kv, ko, kb = jax.random.split(key, 6)

    x = jax.random.normal(kx, (B, T, D_IN), dtype=jnp.float32)
    # deterministic parameter init (scaled normal, pre-transposed to (in, out))
    wq = jax.random.normal(kq, (D_IN, D_OUT), dtype=jnp.float32) * 0.05
    wk = jax.random.normal(kk, (D_IN, D_OUT), dtype=jnp.float32) * 0.05
    wv = jax.random.normal(kv, (D_IN, D_OUT), dtype=jnp.float32) * 0.05
    wo = jax.random.normal(ko, (D_OUT, D_OUT), dtype=jnp.float32) * 0.05
    bo = jax.random.normal(kb, (D_OUT,), dtype=jnp.float32) * 0.05

    # One-time parameter fusion (module-init work, not in the per-call path).
    wqkv, wo_p, bo2 = fuse_attention_params(wq, wk, wv, wo, bo)
    wqkv, wo_p, bo2 = jax.block_until_ready((wqkv, wo_p, bo2))

    out = multi_head_attention(x, wqkv, wo_p, bo2, num_heads=NUM_HEADS)
    out = jax.block_until_ready(out)

    ref = _reference(x, wq, wk, wv, wo, bo, NUM_HEADS)
    assert out.shape == (B, T, D_OUT)
    # tolerance covers bf16 MXU operands + the approximate EUP reciprocal;
    # softmax math itself is f32.
    assert jnp.allclose(out, ref, atol=2e-2, rtol=2e-2), "mismatch vs JAX reference"

    print("KERNEL_OK")
</pallas_src>

<mosaic_0001>
module attributes {stable_mosaic.version = 11 : i64} {
  func.func @_mha_kernel(%arg0: i32, %arg1: memref<16x32xf32, #tpu.memory_space<vmem>>, %arg2: memref<32x96xbf16, #tpu.memory_space<vmem>>, %arg3: memref<32x32xf32, #tpu.memory_space<vmem>>, %arg4: memref<1x32xf32, #tpu.memory_space<vmem>>, %arg5: memref<16x32xf32, #tpu.memory_space<vmem>>) attributes {dimension_semantics = [#tpu.dimension_semantics<arbitrary>], iteration_bounds = array<i64: 1>, scalar_prefetch = 0 : i64, scratch_operands = 0 : i64, tpu.core_type = #tpu.core_type<tc>, window_params = [{pipeline_mode = #tpu.pipeline_mode<synchronous>, transform_indices = @transform_0, window_bounds = array<i64: 16, 32>}, {pipeline_mode = #tpu.pipeline_mode<synchronous>, transform_indices = @transform_1, window_bounds = array<i64: 32, 96>}, {pipeline_mode = #tpu.pipeline_mode<synchronous>, transform_indices = @transform_2, window_bounds = array<i64: 32, 32>}, {pipeline_mode = #tpu.pipeline_mode<synchronous>, transform_indices = @transform_3, window_bounds = array<i64: 1, 32>}, {pipeline_mode = #tpu.pipeline_mode<synchronous>, transform_indices = @transform_4, window_bounds = array<i64: 16, 32>}]} {
    %c0 = arith.constant 0 : index
    %c0_0 = arith.constant 0 : index
    %0 = vector.load %arg1[%c0, %c0_0] : memref<16x32xf32, #tpu.memory_space<vmem>>, vector<16x32xf32>
    %1 = arith.truncf %0 : vector<16x32xf32> to vector<16x32xbf16>
    %c0_1 = arith.constant 0 : index
    %c0_2 = arith.constant 0 : index
    %2 = vector.load %arg2[%c0_1, %c0_2] : memref<32x96xbf16, #tpu.memory_space<vmem>>, vector<32x96xbf16>
    %cst = arith.constant dense<0.000000e+00> : vector<16x96xf32>
    %3 = tpu.matmul %1, %2, %cst {dimension_numbers = #tpu.dot_dimension_numbers<[1], [0], [0], [1], [0, 0, 1, 1], [], []>} : vector<16x32xbf16>, vector<32x96xbf16>, vector<16x96xf32> -> vector<16x96xf32>
    %4 = tpu.iota {dimensions = array<i32: 0>} : vector<8x8xi32>
    %5 = tpu.iota {dimensions = array<i32: 1>} : vector<8x8xi32>
    %6 = arith.cmpi sgt, %5, %4 : vector<8x8xi32>
    %cst_3 = arith.constant -1.000000e+30 : f32
    %cst_4 = arith.constant 0.000000e+00 : f32
    %7 = vector.broadcast %cst_3 : f32 to vector<8x8xf32>
    %8 = vector.broadcast %cst_4 : f32 to vector<8x8xf32>
    %9 = arith.select %6, %7, %8 : vector<8x8xi1>, vector<8x8xf32>
    %c0_5 = arith.constant 0 : index
    %c0_6 = arith.constant 0 : index
    %10 = vector.load %arg4[%c0_5, %c0_6] : memref<1x32xf32, #tpu.memory_space<vmem>>, vector<1x32xf32>
    %cst_7 = arith.constant 0.000000e+00 : f32
    %11 = vector.broadcast %cst_7 : f32 to vector<8x32xf32>
    %12 = vector.extract_strided_slice %3 {offsets = [0, 0], sizes = [8, 8], strides = [1, 1]} : vector<16x96xf32> to vector<8x8xf32>
    %13 = arith.truncf %12 : vector<8x8xf32> to vector<8x8xbf16>
    %14 = vector.extract_strided_slice %3 {offsets = [0, 32], sizes = [8, 8], strides = [1, 1]} : vector<16x96xf32> to vector<8x8xf32>
    %15 = arith.truncf %14 : vector<8x8xf32> to vector<8x8xbf16>
    %16 = vector.extract_strided_slice %3 {offsets = [0, 64], sizes = [8, 8], strides = [1, 1]} : vector<16x96xf32> to vector<8x8xf32>
    %17 = arith.truncf %16 : vector<8x8xf32> to vector<8x8xbf16>
    %cst_8 = arith.constant dense<0.000000e+00> : vector<8x8xf32>
    %18 = tpu.matmul %13, %15, %cst_8 {dimension_numbers = #tpu.dot_dimension_numbers<[1], [1], [0], [0], [0, 0, 1, 0], [], []>} : vector<8x8xbf16>, vector<8x8xbf16>, vector<8x8xf32> -> vector<8x8xf32>
    %cst_9 = arith.constant 0.353553385 : f32
    %19 = vector.broadcast %cst_9 : f32 to vector<8x8xf32>
    %20 = arith.mulf %18, %19 : vector<8x8xf32>
    %21 = arith.addf %20, %9 : vector<8x8xf32>
    %cst_10 = arith.constant dense<0xFF800000> : vector<8xf32>
    %22 = vector.multi_reduction <maximumf>, %21, %cst_10 [1] : vector<8x8xf32> to vector<8xf32>
    %23 = vector.shape_cast %22 : vector<8xf32> to vector<8x1xf32>
    %24 = vector.broadcast %23 : vector<8x1xf32> to vector<8x8xf32>
    %25 = arith.subf %21, %24 : vector<8x8xf32>
    %26 = math.exp %25 : vector<8x8xf32>
    %cst_11 = arith.constant dense<0.000000e+00> : vector<8xf32>
    %27 = vector.multi_reduction <add>, %26, %cst_11 [1] : vector<8x8xf32> to vector<8xf32>
    %28 = vector.shape_cast %27 : vector<8xf32> to vector<8x1xf32>
    %29 = tpu.reciprocal %28 {approx = true} : vector<8x1xf32> -> vector<8x1xf32>
    %30 = vector.broadcast %29 : vector<8x1xf32> to vector<8x8xf32>
    %31 = arith.mulf %26, %30 : vector<8x8xf32>
    %32 = arith.truncf %31 : vector<8x8xf32> to vector<8x8xbf16>
    %cst_12 = arith.constant dense<0.000000e+00> : vector<8x8xf32>
    %33 = tpu.matmul %32, %17, %cst_12 {dimension_numbers = #tpu.dot_dimension_numbers<[1], [0], [0], [1], [0, 0, 1, 1], [], []>} : vector<8x8xbf16>, vector<8x8xbf16>, vector<8x8xf32> -> vector<8x8xf32>
    %c0_13 = arith.constant 0 : index
    %c0_14 = arith.constant 0 : index
    %34 = vector.load %arg3[%c0_13, %c0_14] : memref<32x32xf32, #tpu.memory_space<vmem>>, vector<8x32xf32>
    %35 = arith.truncf %34 : vector<8x32xf32> to vector<8x32xbf16>
    %36 = arith.truncf %33 : vector<8x8xf32> to vector<8x8xbf16>
    %cst_15 = arith.constant dense<0.000000e+00> : vector<8x32xf32>
    %37 = tpu.matmul %36, %35, %cst_15 {dimension_numbers = #tpu.dot_dimension_numbers<[1], [0], [0], [1], [0, 0, 1, 1], [], []>} : vector<8x8xbf16>, vector<8x32xbf16>, vector<8x32xf32> -> vector<8x32xf32>
    %38 = arith.addf %11, %37 : vector<8x32xf32>
    %39 = vector.extract_strided_slice %3 {offsets = [0, 8], sizes = [8, 8], strides = [1, 1]} : vector<16x96xf32> to vector<8x8xf32>
    %40 = arith.truncf %39 : vector<8x8xf32> to vector<8x8xbf16>
    %41 = vector.extract_strided_slice %3 {offsets = [0, 40], sizes = [8, 8], strides = [1, 1]} : vector<16x96xf32> to vector<8x8xf32>
    %42 = arith.truncf %41 : vector<8x8xf32> to vector<8x8xbf16>
    %43 = vector.extract_strided_slice %3 {offsets = [0, 72], sizes = [8, 8], strides = [1, 1]} : vector<16x96xf32> to vector<8x8xf32>
    %44 = arith.truncf %43 : vector<8x8xf32> to vector<8x8xbf16>
    %cst_16 = arith.constant dense<0.000000e+00> : vector<8x8xf32>
    %45 = tpu.matmul %40, %42, %cst_16 {dimension_numbers = #tpu.dot_dimension_numbers<[1], [1], [0], [0], [0, 0, 1, 0], [], []>} : vector<8x8xbf16>, vector<8x8xbf16>, vector<8x8xf32> -> vector<8x8xf32>
    %cst_17 = arith.constant 0.353553385 : f32
    %46 = vector.broadcast %cst_17 : f32 to vector<8x8xf32>
    %47 = arith.mulf %45, %46 : vector<8x8xf32>
    %48 = arith.addf %47, %9 : vector<8x8xf32>
    %cst_18 = arith.constant dense<0xFF800000> : vector<8xf32>
    %49 = vector.multi_reduction <maximumf>, %48, %cst_18 [1] : vector<8x8xf32> to vector<8xf32>
    %50 = vector.shape_cast %49 : vector<8xf32> to vector<8x1xf32>
    %51 = vector.broadcast %50 : vector<8x1xf32> to vector<8x8xf32>
    %52 = arith.subf %48, %51 : vector<8x8xf32>
    %53 = math.exp %52 : vector<8x8xf32>
    %cst_19 = arith.constant dense<0.000000e+00> : vector<8xf32>
    %54 = vector.multi_reduction <add>, %53, %cst_19 [1] : vector<8x8xf32> to vector<8xf32>
    %55 = vector.shape_cast %54 : vector<8xf32> to vector<8x1xf32>
    %56 = tpu.reciprocal %55 {approx = true} : vector<8x1xf32> -> vector<8x1xf32>
    %57 = vector.broadcast %56 : vector<8x1xf32> to vector<8x8xf32>
    %58 = arith.mulf %53, %57 : vector<8x8xf32>
    %59 = arith.truncf %58 : vector<8x8xf32> to vector<8x8xbf16>
    %cst_20 = arith.constant dense<0.000000e+00> : vector<8x8xf32>
    %60 = tpu.matmul %59, %44, %cst_20 {dimension_numbers = #tpu.dot_dimension_numbers<[1], [0], [0], [1], [0, 0, 1, 1], [], []>} : vector<8x8xbf16>, vector<8x8xbf16>, vector<8x8xf32> -> vector<8x8xf32>
    %c8 = arith.constant 8 : index
    %c0_21 = arith.constant 0 : index
    %61 = vector.load %arg3[%c8, %c0_21] : memref<32x32xf32, #tpu.memory_space<vmem>>, vector<8x32xf32>
    %62 = arith.truncf %61 : vector<8x32xf32> to vector<8x32xbf16>
    %63 = arith.truncf %60 : vector<8x8xf32> to vector<8x8xbf16>
    %cst_22 = arith.constant dense<0.000000e+00> : vector<8x32xf32>
    %64 = tpu.matmul %63, %62, %cst_22 {dimension_numbers = #tpu.dot_dimension_numbers<[1], [0], [0], [1], [0, 0, 1, 1], [], []>} : vector<8x8xbf16>, vector<8x32xbf16>, vector<8x32xf32> -> vector<8x32xf32>
    %65 = arith.addf %38, %64 : vector<8x32xf32>
    %66 = vector.extract_strided_slice %3 {offsets = [0, 16], sizes = [8, 8], strides = [1, 1]} : vector<16x96xf32> to vector<8x8xf32>
    %67 = arith.truncf %66 : vector<8x8xf32> to vector<8x8xbf16>
    %68 = vector.extract_strided_slice %3 {offsets = [0, 48], sizes = [8, 8], strides = [1, 1]} : vector<16x96xf32> to vector<8x8xf32>
    %69 = arith.truncf %68 : vector<8x8xf32> to vector<8x8xbf16>
    %70 = vector.extract_strided_slice %3 {offsets = [0, 80], sizes = [8, 8], strides = [1, 1]} : vector<16x96xf32> to vector<8x8xf32>
    %71 = arith.truncf %70 : vector<8x8xf32> to vector<8x8xbf16>
    %cst_23 = arith.constant dense<0.000000e+00> : vector<8x8xf32>
    %72 = tpu.matmul %67, %69, %cst_23 {dimension_numbers = #tpu.dot_dimension_numbers<[1], [1], [0], [0], [0, 0, 1, 0], [], []>} : vector<8x8xbf16>, vector<8x8xbf16>, vector<8x8xf32> -> vector<8x8xf32>
    %cst_24 = arith.constant 0.353553385 : f32
    %73 = vector.broadcast %cst_24 : f32 to vector<8x8xf32>
    %74 = arith.mulf %72, %73 : vector<8x8xf32>
    %75 = arith.addf %74, %9 : vector<8x8xf32>
    %cst_25 = arith.constant dense<0xFF800000> : vector<8xf32>
    %76 = vector.multi_reduction <maximumf>, %75, %cst_25 [1] : vector<8x8xf32> to vector<8xf32>
    %77 = vector.shape_cast %76 : vector<8xf32> to vector<8x1xf32>
    %78 = vector.broadcast %77 : vector<8x1xf32> to vector<8x8xf32>
    %79 = arith.subf %75, %78 : vector<8x8xf32>
    %80 = math.exp %79 : vector<8x8xf32>
    %cst_26 = arith.constant dense<0.000000e+00> : vector<8xf32>
    %81 = vector.multi_reduction <add>, %80, %cst_26 [1] : vector<8x8xf32> to vector<8xf32>
    %82 = vector.shape_cast %81 : vector<8xf32> to vector<8x1xf32>
    %83 = tpu.reciprocal %82 {approx = true} : vector<8x1xf32> -> vector<8x1xf32>
    %84 = vector.broadcast %83 : vector<8x1xf32> to vector<8x8xf32>
    %85 = arith.mulf %80, %84 : vector<8x8xf32>
    %86 = arith.truncf %85 : vector<8x8xf32> to vector<8x8xbf16>
    %cst_27 = arith.constant dense<0.000000e+00> : vector<8x8xf32>
    %87 = tpu.matmul %86, %71, %cst_27 {dimension_numbers = #tpu.dot_dimension_numbers<[1], [0], [0], [1], [0, 0, 1, 1], [], []>} : vector<8x8xbf16>, vector<8x8xbf16>, vector<8x8xf32> -> vector<8x8xf32>
    %c16 = arith.constant 16 : index
    %c0_28 = arith.constant 0 : index
    %88 = vector.load %arg3[%c16, %c0_28] : memref<32x32xf32, #tpu.memory_space<vmem>>, vector<8x32xf32>
    %89 = arith.truncf %88 : vector<8x32xf32> to vector<8x32xbf16>
    %90 = arith.truncf %87 : vector<8x8xf32> to vector<8x8xbf16>
    %cst_29 = arith.constant dense<0.000000e+00> : vector<8x32xf32>
    %91 = tpu.matmul %90, %89, %cst_29 {dimension_numbers = #tpu.dot_dimension_numbers<[1], [0], [0], [1], [0, 0, 1, 1], [], []>} : vector<8x8xbf16>, vector<8x32xbf16>, vector<8x32xf32> -> vector<8x32xf32>
    %92 = arith.addf %65, %91 : vector<8x32xf32>
    %93 = vector.extract_strided_slice %3 {offsets = [0, 24], sizes = [8, 8], strides = [1, 1]} : vector<16x96xf32> to vector<8x8xf32>
    %94 = arith.truncf %93 : vector<8x8xf32> to vector<8x8xbf16>
    %95 = vector.extract_strided_slice %3 {offsets = [0, 56], sizes = [8, 8], strides = [1, 1]} : vector<16x96xf32> to vector<8x8xf32>
    %96 = arith.truncf %95 : vector<8x8xf32> to vector<8x8xbf16>
    %97 = vector.extract_strided_slice %3 {offsets = [0, 88], sizes = [8, 8], strides = [1, 1]} : vector<16x96xf32> to vector<8x8xf32>
    %98 = arith.truncf %97 : vector<8x8xf32> to vector<8x8xbf16>
    %cst_30 = arith.constant dense<0.000000e+00> : vector<8x8xf32>
    %99 = tpu.matmul %94, %96, %cst_30 {dimension_numbers = #tpu.dot_dimension_numbers<[1], [1], [0], [0], [0, 0, 1, 0], [], []>} : vector<8x8xbf16>, vector<8x8xbf16>, vector<8x8xf32> -> vector<8x8xf32>
    %cst_31 = arith.constant 0.353553385 : f32
    %100 = vector.broadcast %cst_31 : f32 to vector<8x8xf32>
    %101 = arith.mulf %99, %100 : vector<8x8xf32>
    %102 = arith.addf %101, %9 : vector<8x8xf32>
    %cst_32 = arith.constant dense<0xFF800000> : vector<8xf32>
    %103 = vector.multi_reduction <maximumf>, %102, %cst_32 [1] : vector<8x8xf32> to vector<8xf32>
    %104 = vector.shape_cast %103 : vector<8xf32> to vector<8x1xf32>
    %105 = vector.broadcast %104 : vector<8x1xf32> to vector<8x8xf32>
    %106 = arith.subf %102, %105 : vector<8x8xf32>
    %107 = math.exp %106 : vector<8x8xf32>
    %cst_33 = arith.constant dense<0.000000e+00> : vector<8xf32>
    %108 = vector.multi_reduction <add>, %107, %cst_33 [1] : vector<8x8xf32> to vector<8xf32>
    %109 = vector.shape_cast %108 : vector<8xf32> to vector<8x1xf32>
    %110 = tpu.reciprocal %109 {approx = true} : vector<8x1xf32> -> vector<8x1xf32>
    %111 = vector.broadcast %110 : vector<8x1xf32> to vector<8x8xf32>
    %112 = arith.mulf %107, %111 : vector<8x8xf32>
    %113 = arith.truncf %112 : vector<8x8xf32> to vector<8x8xbf16>
    %cst_34 = arith.constant dense<0.000000e+00> : vector<8x8xf32>
    %114 = tpu.matmul %113, %98, %cst_34 {dimension_numbers = #tpu.dot_dimension_numbers<[1], [0], [0], [1], [0, 0, 1, 1], [], []>} : vector<8x8xbf16>, vector<8x8xbf16>, vector<8x8xf32> -> vector<8x8xf32>
    %c24 = arith.constant 24 : index
    %c0_35 = arith.constant 0 : index
    %115 = vector.load %arg3[%c24, %c0_35] : memref<32x32xf32, #tpu.memory_space<vmem>>, vector<8x32xf32>
    %116 = arith.truncf %115 : vector<8x32xf32> to vector<8x32xbf16>
    %117 = arith.truncf %114 : vector<8x8xf32> to vector<8x8xbf16>
    %cst_36 = arith.constant dense<0.000000e+00> : vector<8x32xf32>
    %118 = tpu.matmul %117, %116, %cst_36 {dimension_numbers = #tpu.dot_dimension_numbers<[1], [0], [0], [1], [0, 0, 1, 1], [], []>} : vector<8x8xbf16>, vector<8x32xbf16>, vector<8x32xf32> -> vector<8x32xf32>
    %119 = arith.addf %92, %118 : vector<8x32xf32>
    %120 = vector.broadcast %10 : vector<1x32xf32> to vector<8x32xf32>
    %121 = arith.addf %119, %120 : vector<8x32xf32>
    %c0_37 = arith.constant 0 : index
    %c0_38 = arith.constant 0 : index
    %122 = vector.load %arg5[%c0_37, %c0_38] : memref<16x32xf32, #tpu.memory_space<vmem>>, vector<8x32xf32>
    tpu.vector_store %arg5[%c0_37, %c0_38], %121 {strides = array<i32>} : memref<16x32xf32, #tpu.memory_space<vmem>>, vector<8x32xf32>,
    %cst_39 = arith.constant 0.000000e+00 : f32
    %123 = vector.broadcast %cst_39 : f32 to vector<8x32xf32>
    %124 = vector.extract_strided_slice %3 {offsets = [8, 0], sizes = [8, 8], strides = [1, 1]} : vector<16x96xf32> to vector<8x8xf32>
    %125 = arith.truncf %124 : vector<8x8xf32> to vector<8x8xbf16>
    %126 = vector.extract_strided_slice %3 {offsets = [8, 32], sizes = [8, 8], strides = [1, 1]} : vector<16x96xf32> to vector<8x8xf32>
    %127 = arith.truncf %126 : vector<8x8xf32> to vector<8x8xbf16>
    %128 = vector.extract_strided_slice %3 {offsets = [8, 64], sizes = [8, 8], strides = [1, 1]} : vector<16x96xf32> to vector<8x8xf32>
    %129 = arith.truncf %128 : vector<8x8xf32> to vector<8x8xbf16>
    %cst_40 = arith.constant dense<0.000000e+00> : vector<8x8xf32>
    %130 = tpu.matmul %125, %127, %cst_40 {dimension_numbers = #tpu.dot_dimension_numbers<[1], [1], [0], [0], [0, 0, 1, 0], [], []>} : vector<8x8xbf16>, vector<8x8xbf16>, vector<8x8xf32> -> vector<8x8xf32>
    %cst_41 = arith.constant 0.353553385 : f32
    %131 = vector.broadcast %cst_41 : f32 to vector<8x8xf32>
    %132 = arith.mulf %130, %131 : vector<8x8xf32>
    %133 = arith.addf %132, %9 : vector<8x8xf32>
    %cst_42 = arith.constant dense<0xFF800000> : vector<8xf32>
    %134 = vector.multi_reduction <maximumf>, %133, %cst_42 [1] : vector<8x8xf32> to vector<8xf32>
    %135 = vector.shape_cast %134 : vector<8xf32> to vector<8x1xf32>
    %136 = vector.broadcast %135 : vector<8x1xf32> to vector<8x8xf32>
    %137 = arith.subf %133, %136 : vector<8x8xf32>
    %138 = math.exp %137 : vector<8x8xf32>
    %cst_43 = arith.constant dense<0.000000e+00> : vector<8xf32>
    %139 = vector.multi_reduction <add>, %138, %cst_43 [1] : vector<8x8xf32> to vector<8xf32>
    %140 = vector.shape_cast %139 : vector<8xf32> to vector<8x1xf32>
    %141 = tpu.reciprocal %140 {approx = true} : vector<8x1xf32> -> vector<8x1xf32>
    %142 = vector.broadcast %141 : vector<8x1xf32> to vector<8x8xf32>
    %143 = arith.mulf %138, %142 : vector<8x8xf32>
    %144 = arith.truncf %143 : vector<8x8xf32> to vector<8x8xbf16>
    %cst_44 = arith.constant dense<0.000000e+00> : vector<8x8xf32>
    %145 = tpu.matmul %144, %129, %cst_44 {dimension_numbers = #tpu.dot_dimension_numbers<[1], [0], [0], [1], [0, 0, 1, 1], [], []>} : vector<8x8xbf16>, vector<8x8xbf16>, vector<8x8xf32> -> vector<8x8xf32>
    %c0_45 = arith.constant 0 : index
    %c0_46 = arith.constant 0 : index
    %146 = vector.load %arg3[%c0_45, %c0_46] : memref<32x32xf32, #tpu.memory_space<vmem>>, vector<8x32xf32>
    %147 = arith.truncf %146 : vector<8x32xf32> to vector<8x32xbf16>
    %148 = arith.truncf %145 : vector<8x8xf32> to vector<8x8xbf16>
    %cst_47 = arith.constant dense<0.000000e+00> : vector<8x32xf32>
    %149 = tpu.matmul %148, %147, %cst_47 {dimension_numbers = #tpu.dot_dimension_numbers<[1], [0], [0], [1], [0, 0, 1, 1], [], []>} : vector<8x8xbf16>, vector<8x32xbf16>, vector<8x32xf32> -> vector<8x32xf32>
    %150 = arith.addf %123, %149 : vector<8x32xf32>
    %151 = vector.extract_strided_slice %3 {offsets = [8, 8], sizes = [8, 8], strides = [1, 1]} : vector<16x96xf32> to vector<8x8xf32>
    %152 = arith.truncf %151 : vector<8x8xf32> to vector<8x8xbf16>
    %153 = vector.extract_strided_slice %3 {offsets = [8, 40], sizes = [8, 8], strides = [1, 1]} : vector<16x96xf32> to vector<8x8xf32>
    %154 = arith.truncf %153 : vector<8x8xf32> to vector<8x8xbf16>
    %155 = vector.extract_strided_slice %3 {offsets = [8, 72], sizes = [8, 8], strides = [1, 1]} : vector<16x96xf32> to vector<8x8xf32>
    %156 = arith.truncf %155 : vector<8x8xf32> to vector<8x8xbf16>
    %cst_48 = arith.constant dense<0.000000e+00> : vector<8x8xf32>
    %157 = tpu.matmul %152, %154, %cst_48 {dimension_numbers = #tpu.dot_dimension_numbers<[1], [1], [0], [0], [0, 0, 1, 0], [], []>} : vector<8x8xbf16>, vector<8x8xbf16>, vector<8x8xf32> -> vector<8x8xf32>
    %cst_49 = arith.constant 0.353553385 : f32
    %158 = vector.broadcast %cst_49 : f32 to vector<8x8xf32>
    %159 = arith.mulf %157, %158 : vector<8x8xf32>
    %160 = arith.addf %159, %9 : vector<8x8xf32>
    %cst_50 = arith.constant dense<0xFF800000> : vector<8xf32>
    %161 = vector.multi_reduction <maximumf>, %160, %cst_50 [1] : vector<8x8xf32> to vector<8xf32>
    %162 = vector.shape_cast %161 : vector<8xf32> to vector<8x1xf32>
    %163 = vector.broadcast %162 : vector<8x1xf32> to vector<8x8xf32>
    %164 = arith.subf %160, %163 : vector<8x8xf32>
    %165 = math.exp %164 : vector<8x8xf32>
    %cst_51 = arith.constant dense<0.000000e+00> : vector<8xf32>
    %166 = vector.multi_reduction <add>, %165, %cst_51 [1] : vector<8x8xf32> to vector<8xf32>
    %167 = vector.shape_cast %166 : vector<8xf32> to vector<8x1xf32>
    %168 = tpu.reciprocal %167 {approx = true} : vector<8x1xf32> -> vector<8x1xf32>
    %169 = vector.broadcast %168 : vector<8x1xf32> to vector<8x8xf32>
    %170 = arith.mulf %165, %169 : vector<8x8xf32>
    %171 = arith.truncf %170 : vector<8x8xf32> to vector<8x8xbf16>
    %cst_52 = arith.constant dense<0.000000e+00> : vector<8x8xf32>
    %172 = tpu.matmul %171, %156, %cst_52 {dimension_numbers = #tpu.dot_dimension_numbers<[1], [0], [0], [1], [0, 0, 1, 1], [], []>} : vector<8x8xbf16>, vector<8x8xbf16>, vector<8x8xf32> -> vector<8x8xf32>
    %c8_53 = arith.constant 8 : index
    %c0_54 = arith.constant 0 : index
    %173 = vector.load %arg3[%c8_53, %c0_54] : memref<32x32xf32, #tpu.memory_space<vmem>>, vector<8x32xf32>
    %174 = arith.truncf %173 : vector<8x32xf32> to vector<8x32xbf16>
    %175 = arith.truncf %172 : vector<8x8xf32> to vector<8x8xbf16>
    %cst_55 = arith.constant dense<0.000000e+00> : vector<8x32xf32>
    %176 = tpu.matmul %175, %174, %cst_55 {dimension_numbers = #tpu.dot_dimension_numbers<[1], [0], [0], [1], [0, 0, 1, 1], [], []>} : vector<8x8xbf16>, vector<8x32xbf16>, vector<8x32xf32> -> vector<8x32xf32>
    %177 = arith.addf %150, %176 : vector<8x32xf32>
    %178 = vector.extract_strided_slice %3 {offsets = [8, 16], sizes = [8, 8], strides = [1, 1]} : vector<16x96xf32> to vector<8x8xf32>
    %179 = arith.truncf %178 : vector<8x8xf32> to vector<8x8xbf16>
    %180 = vector.extract_strided_slice %3 {offsets = [8, 48], sizes = [8, 8], strides = [1, 1]} : vector<16x96xf32> to vector<8x8xf32>
    %181 = arith.truncf %180 : vector<8x8xf32> to vector<8x8xbf16>
    %182 = vector.extract_strided_slice %3 {offsets = [8, 80], sizes = [8, 8], strides = [1, 1]} : vector<16x96xf32> to vector<8x8xf32>
    %183 = arith.truncf %182 : vector<8x8xf32> to vector<8x8xbf16>
    %cst_56 = arith.constant dense<0.000000e+00> : vector<8x8xf32>
    %184 = tpu.matmul %179, %181, %cst_56 {dimension_numbers = #tpu.dot_dimension_numbers<[1], [1], [0], [0], [0, 0, 1, 0], [], []>} : vector<8x8xbf16>, vector<8x8xbf16>, vector<8x8xf32> -> vector<8x8xf32>
    %cst_57 = arith.constant 0.353553385 : f32
    %185 = vector.broadcast %cst_57 : f32 to vector<8x8xf32>
    %186 = arith.mulf %184, %185 : vector<8x8xf32>
    %187 = arith.addf %186, %9 : vector<8x8xf32>
    %cst_58 = arith.constant dense<0xFF800000> : vector<8xf32>
    %188 = vector.multi_reduction <maximumf>, %187, %cst_58 [1] : vector<8x8xf32> to vector<8xf32>
    %189 = vector.shape_cast %188 : vector<8xf32> to vector<8x1xf32>
    %190 = vector.broadcast %189 : vector<8x1xf32> to vector<8x8xf32>
    %191 = arith.subf %187, %190 : vector<8x8xf32>
    %192 = math.exp %191 : vector<8x8xf32>
    %cst_59 = arith.constant dense<0.000000e+00> : vector<8xf32>
    %193 = vector.multi_reduction <add>, %192, %cst_59 [1] : vector<8x8xf32> to vector<8xf32>
    %194 = vector.shape_cast %193 : vector<8xf32> to vector<8x1xf32>
    %195 = tpu.reciprocal %194 {approx = true} : vector<8x1xf32> -> vector<8x1xf32>
    %196 = vector.broadcast %195 : vector<8x1xf32> to vector<8x8xf32>
    %197 = arith.mulf %192, %196 : vector<8x8xf32>
    %198 = arith.truncf %197 : vector<8x8xf32> to vector<8x8xbf16>
    %cst_60 = arith.constant dense<0.000000e+00> : vector<8x8xf32>
    %199 = tpu.matmul %198, %183, %cst_60 {dimension_numbers = #tpu.dot_dimension_numbers<[1], [0], [0], [1], [0, 0, 1, 1], [], []>} : vector<8x8xbf16>, vector<8x8xbf16>, vector<8x8xf32> -> vector<8x8xf32>
    %c16_61 = arith.constant 16 : index
    %c0_62 = arith.constant 0 : index
    %200 = vector.load %arg3[%c16_61, %c0_62] : memref<32x32xf32, #tpu.memory_space<vmem>>, vector<8x32xf32>
    %201 = arith.truncf %200 : vector<8x32xf32> to vector<8x32xbf16>
    %202 = arith.truncf %199 : vector<8x8xf32> to vector<8x8xbf16>
    %cst_63 = arith.constant dense<0.000000e+00> : vector<8x32xf32>
    %203 = tpu.matmul %202, %201, %cst_63 {dimension_numbers = #tpu.dot_dimension_numbers<[1], [0], [0], [1], [0, 0, 1, 1], [], []>} : vector<8x8xbf16>, vector<8x32xbf16>, vector<8x32xf32> -> vector<8x32xf32>
    %204 = arith.addf %177, %203 : vector<8x32xf32>
    %205 = vector.extract_strided_slice %3 {offsets = [8, 24], sizes = [8, 8], strides = [1, 1]} : vector<16x96xf32> to vector<8x8xf32>
    %206 = arith.truncf %205 : vector<8x8xf32> to vector<8x8xbf16>
    %207 = vector.extract_strided_slice %3 {offsets = [8, 56], sizes = [8, 8], strides = [1, 1]} : vector<16x96xf32> to vector<8x8xf32>
    %208 = arith.truncf %207 : vector<8x8xf32> to vector<8x8xbf16>
    %209 = vector.extract_strided_slice %3 {offsets = [8, 88], sizes = [8, 8], strides = [1, 1]} : vector<16x96xf32> to vector<8x8xf32>
    %210 = arith.truncf %209 : vector<8x8xf32> to vector<8x8xbf16>
    %cst_64 = arith.constant dense<0.000000e+00> : vector<8x8xf32>
    %211 = tpu.matmul %206, %208, %cst_64 {dimension_numbers = #tpu.dot_dimension_numbers<[1], [1], [0], [0], [0, 0, 1, 0], [], []>} : vector<8x8xbf16>, vector<8x8xbf16>, vector<8x8xf32> -> vector<8x8xf32>
    %cst_65 = arith.constant 0.353553385 : f32
    %212 = vector.broadcast %cst_65 : f32 to vector<8x8xf32>
    %213 = arith.mulf %211, %212 : vector<8x8xf32>
    %214 = arith.addf %213, %9 : vector<8x8xf32>
    %cst_66 = arith.constant dense<0xFF800000> : vector<8xf32>
    %215 = vector.multi_reduction <maximumf>, %214, %cst_66 [1] : vector<8x8xf32> to vector<8xf32>
    %216 = vector.shape_cast %215 : vector<8xf32> to vector<8x1xf32>
    %217 = vector.broadcast %216 : vector<8x1xf32> to vector<8x8xf32>
    %218 = arith.subf %214, %217 : vector<8x8xf32>
    %219 = math.exp %218 : vector<8x8xf32>
    %cst_67 = arith.constant dense<0.000000e+00> : vector<8xf32>
    %220 = vector.multi_reduction <add>, %219, %cst_67 [1] : vector<8x8xf32> to vector<8xf32>
    %221 = vector.shape_cast %220 : vector<8xf32> to vector<8x1xf32>
    %222 = tpu.reciprocal %221 {approx = true} : vector<8x1xf32> -> vector<8x1xf32>
    %223 = vector.broadcast %222 : vector<8x1xf32> to vector<8x8xf32>
    %224 = arith.mulf %219, %223 : vector<8x8xf32>
    %225 = arith.truncf %224 : vector<8x8xf32> to vector<8x8xbf16>
    %cst_68 = arith.constant dense<0.000000e+00> : vector<8x8xf32>
    %226 = tpu.matmul %225, %210, %cst_68 {dimension_numbers = #tpu.dot_dimension_numbers<[1], [0], [0], [1], [0, 0, 1, 1], [], []>} : vector<8x8xbf16>, vector<8x8xbf16>, vector<8x8xf32> -> vector<8x8xf32>
    %c24_69 = arith.constant 24 : index
    %c0_70 = arith.constant 0 : index
    %227 = vector.load %arg3[%c24_69, %c0_70] : memref<32x32xf32, #tpu.memory_space<vmem>>, vector<8x32xf32>
    %228 = arith.truncf %227 : vector<8x32xf32> to vector<8x32xbf16>
    %229 = arith.truncf %226 : vector<8x8xf32> to vector<8x8xbf16>
    %cst_71 = arith.constant dense<0.000000e+00> : vector<8x32xf32>
    %230 = tpu.matmul %229, %228, %cst_71 {dimension_numbers = #tpu.dot_dimension_numbers<[1], [0], [0], [1], [0, 0, 1, 1], [], []>} : vector<8x8xbf16>, vector<8x32xbf16>, vector<8x32xf32> -> vector<8x32xf32>
    %231 = arith.addf %204, %230 : vector<8x32xf32>
    %232 = vector.broadcast %10 : vector<1x32xf32> to vector<8x32xf32>
    %233 = arith.addf %231, %232 : vector<8x32xf32>
    %c8_72 = arith.constant 8 : index
    %c0_73 = arith.constant 0 : index
    %234 = vector.load %arg5[%c8_72, %c0_73] : memref<16x32xf32, #tpu.memory_space<vmem>>, vector<8x32xf32>
    tpu.vector_store %arg5[%c8_72, %c0_73], %233 {strides = array<i32>} : memref<16x32xf32, #tpu.memory_space<vmem>>, vector<8x32xf32>,
    return
  }
  func.func @transform_0(%arg0: i32) -> (i32, i32) {
    %c0_i32 = arith.constant 0 : i32
    %c0_i32_0 = arith.constant 0 : i32
    %c0_i32_1 = arith.constant 0 : i32
    return %c0_i32, %c0_i32_0 : i32, i32
  }
  func.func @transform_1(%arg0: i32) -> (i32, i32) {
    %c0_i32 = arith.constant 0 : i32
    %c0_i32_0 = arith.constant 0 : i32
    %c0_i32_1 = arith.constant 0 : i32
    return %c0_i32, %c0_i32_0 : i32, i32
  }
  func.func @transform_2(%arg0: i32) -> (i32, i32) {
    %c0_i32 = arith.constant 0 : i32
    %c0_i32_0 = arith.constant 0 : i32
    %c0_i32_1 = arith.constant 0 : i32
    return %c0_i32, %c0_i32_0 : i32, i32
  }
  func.func @transform_3(%arg0: i32) -> (i32, i32) {
    %c0_i32 = arith.constant 0 : i32
    %c0_i32_0 = arith.constant 0 : i32
    %c0_i32_1 = arith.constant 0 : i32
    return %c0_i32, %c0_i32_0 : i32, i32
  }
  func.func @transform_4(%arg0: i32) -> (i32, i32) {
    %c0_i32 = arith.constant 0 : i32
    %c0_i32_0 = arith.constant 0 : i32
    %c0_i32_1 = arith.constant 0 : i32
    return %c0_i32, %c0_i32_0 : i32, i32
  }
}

</mosaic_0001>

<llo_original>
// kernel: multi_head_attention.1
$region0: #{multi_head_attention.1}
  #allocation0 [shape = 'u32[]', space=smem, size = 0x4, offset = 0x4, fixed_abs, tag = 'smem constant byte address 0x4 - core index']
  #allocation1 [shape = 'u32[144,128]{1,0:T(1,128)}', space=vmem, size = 0x12000, scoped, tag = 'internal scratch']
  %s0 = inlined_call_operand.hbm [shape: f32[16,32], index: 0, kind: input, shape index: {}]
  %s1 = inlined_call_operand.hbm [shape: bf16[32,96], index: 1, kind: input, shape index: {}]
  %s2 = inlined_call_operand.hbm [shape: f32[32,32], index: 2, kind: input, shape index: {}]
  %s3 = inlined_call_operand.vmem [shape: f32[1,32], index: 3, kind: input, shape index: {}]
  %s4 = inlined_call_operand.hbm [shape: f32[16,32], index: 4, kind: output, shape index: {}]
  %s5 = sld [smem:[#allocation0]]
  $region38: #{multi_head_attention.1} parent=0
    _
  %s7 = ssub.s32 1, %s5
  %s8 = scalar_select 0, %s7, %s5
  $region1: #{multi_head_attention.1} parent=0
    #allocation2 [shape = 'u8[8192]{0}', space=vmem, size = 0x2000, scoped, tag = 'input window, operand 0, single buffered']
    #allocation3 [shape = 's32[1]{0}', space=sflag, size = 0x4, scoped, tag = 'scoped memory for multi_head_attention.1']
    #allocation4 [shape = 's32[1]{0}', space=sflag, size = 0x4, scoped, tag = 'scoped memory for multi_head_attention.1']
    #allocation5 [shape = 'u8[8192]{0}', space=vmem, size = 0x2000, scoped, tag = 'input window, operand 1, single buffered']
    #allocation6 [shape = 's32[1]{0}', space=sflag, size = 0x4, scoped, tag = 'scoped memory for multi_head_attention.1']
    #allocation7 [shape = 'u8[16384]{0}', space=vmem, size = 0x4000, scoped, tag = 'input window, operand 2, single buffered']
    #allocation8 [shape = 'u8[8192]{0}', space=vmem, size = 0x2000, scoped, tag = 'output window, operand 0, single buffered']
    %9 = vsyncpa [#allocation3], 0
    %10 = vsyncpa [#allocation6], 0
    %11 = vsyncpa [#allocation4], 0
    // Predicated region
    $region2: #{multi_head_attention.1} parent=1 // pred_check
      _
    $region3: #{multi_head_attention.1} parent=1 // pred_check_branch
      %13 = sbr.rel (0) target = $region5
    $region4: #{multi_head_attention.1} parent=1 // pred_region
      %s15 = ssub.s32 256, 256
      %16 = vsyncadd [#allocation3], %s15
      %s17 = sshll.u32 [#allocation2], 4
      %s18 = int_to_ptr.vmem [resolvable:$true] %s17
      %23 = dma.hbm_to_vmem [thread:$0]  %s0, 256, %s18, [#allocation3], 128, 128, 8
    $region5: #{multi_head_attention.1} parent=1 // pred_fallthru
      _
    // Predicated region
    $region6: #{multi_head_attention.1} parent=1 // pred_check
      _
    $region7: #{multi_head_attention.1} parent=1 // pred_check_branch
      %25 = sbr.rel (0) target = $region9
    $region8: #{multi_head_attention.1} parent=1 // pred_region
      %s27 = ssub.s32 256, 256
      %28 = vsyncadd [#allocation6], %s27
      %s29 = sshll.u32 [#allocation5], 4
      %s30 = int_to_ptr.vmem [resolvable:$true] %s29
      %35 = dma.hbm_to_vmem [thread:$0]  %s1, 256, %s30, [#allocation6], 64, 64, 4
    $region9: #{multi_head_attention.1} parent=1 // pred_fallthru
      _
    // Predicated region
    $region10: #{multi_head_attention.1} parent=1 // pred_check
      _
    $region11: #{multi_head_attention.1} parent=1 // pred_check_branch
      %37 = sbr.rel (0) target = $region13
    $region12: #{multi_head_attention.1} parent=1 // pred_region
      %s39 = ssub.s32 512, 512
      %40 = vsyncadd [#allocation6], %s39
      %s41 = sshll.u32 [#allocation7], 4
      %s42 = int_to_ptr.vmem [resolvable:$true] %s41
      %47 = dma.hbm_to_vmem [thread:$0]  %s2, 512, %s42, [#allocation6], 128, 128, 8
    $region13: #{multi_head_attention.1} parent=1 // pred_fallthru
      _
    // Predicated region
    $region14: #{multi_head_attention.1} parent=1 // pred_check
      _
    $region15: #{multi_head_attention.1} parent=1 // pred_check_branch
      %49 = sbr.rel (0) target = $region17
    $region16: #{multi_head_attention.1} parent=1 // pred_region
      _
    $region17: #{multi_head_attention.1} parent=1 // pred_fallthru
      _
    // Predicated region
    $region18: #{multi_head_attention.1} parent=1 // pred_check
      _
    $region19: #{multi_head_attention.1} parent=1 // pred_check_branch
      %51 = sbr.rel (0) target = $region21
    $region20: #{multi_head_attention.1} parent=1 // pred_region
      %52 = dma.done [#allocation3], 256
    $region21: #{multi_head_attention.1} parent=1 // pred_fallthru
      _
    // Predicated region
    $region22: #{multi_head_attention.1} parent=1 // pred_check
      _
    $region23: #{multi_head_attention.1} parent=1 // pred_check_branch
      %54 = sbr.rel (0) target = $region25
    $region24: #{multi_head_attention.1} parent=1 // pred_region
      %55 = dma.done [#allocation6], 256
    $region25: #{multi_head_attention.1} parent=1 // pred_fallthru
      _
    // Predicated region
    $region26: #{multi_head_attention.1} parent=1 // pred_check
      _
    $region27: #{multi_head_attention.1} parent=1 // pred_check_branch
      %57 = sbr.rel (0) target = $region29
    $region28: #{multi_head_attention.1} parent=1 // pred_region
      %58 = dma.done [#allocation6], 512
    $region29: #{multi_head_attention.1} parent=1 // pred_fallthru
      _
    %v60 = vld [vmem:[#allocation2] sm:$0xff]
    %v61 = vld [vmem:[#allocation2 + $0x8] sm:$0xff]
    %v62 = vpack.c.bf16 %v61, %v60
    %v63 = vld [vmem:[#allocation5] sm:$0xf]
    %v64 = vld [vmem:[#allocation5 + $0x4] sm:$0xf]
    %v65 = vld [vmem:[#allocation5 + $0x8] sm:$0xf]
    %v66 = vld [vmem:[#allocation5 + $0xc] sm:$0xf]
    %v71 = vunpack.c.l.b16 %v63
    %v72 = vunpack.c.l.b16 %v64
    %v73 = vunpack.c.l.b16 %v65
    %v74 = vunpack.c.l.b16 %v66
    %v75 = vpack.c.b16 %v72, %v71
    %v76 = vpack.c.b16 %v74, %v73
    %vm79 = vcmask 261120
    %v81 = vsel %vm79, %v62, 0
    %83 = vmatprep.subr.bf16.mxu0 0
    %84 = vmatpush1.bf16.msra.mxu0 0
    %85 = vmatprep.subr.bf16.mxu0 0
    %86 = vmatpush1.bf16.msra.mxu0 0
    %87 = vmatprep.subr.bf16.mxu0 0
    %88 = vmatpush1.bf16.msra.mxu0 0
    %89 = vmatprep.subr.bf16.mxu0 0
    %90 = vmatpush1.bf16.msra.mxu0 0
    %91 = vmatprep.subr.bf16.mxu0 0
    %92 = vmatpush1.bf16.msra.mxu0 0
    %93 = vmatprep.subr.bf16.mxu0 0
    %94 = vmatpush1.bf16.msra.mxu0 0
    %95 = vmatprep.subr.bf16.mxu0 0
    %96 = vmatpush1.bf16.msra.mxu0 %v76
    %97 = vmatprep.subr.bf16.mxu0 0
    %98 = vmatpush1.bf16.msra.mxu0 %v75
    %99 = vmatprep.subr.bf16.mxu0 0
    %100 = vmatpush2.bf16.msra.mxu0 0
    %101 = vmatprep.subr.bf16.mxu0 0
    %102 = vmatpush2.bf16.msra.mxu0 0
    %103 = vmatprep.subr.bf16.mxu0 0
    %104 = vmatpush2.bf16.msra.mxu0 0
    %105 = vmatprep.subr.bf16.mxu0 0
    %106 = vmatpush2.bf16.msra.mxu0 0
    %107 = vmatprep.subr.bf16.mxu0 0
    %108 = vmatpush2.bf16.msra.mxu0 0
    %109 = vmatprep.subr.bf16.mxu0 0
    %110 = vmatpush2.bf16.msra.mxu0 0
    %111 = vmatprep.subr.bf16.mxu0 0
    %112 = vmatpush2.bf16.msra.mxu0 0
    %113 = vmatprep.subr.bf16.mxu0 0
    %114 = vmatpush2.bf16.msra.mxu0 0
    %115 = vmatprep.mubr.bf16.mxu0 0
    %116 = vmatmul.mubr.bf16.gmra.mxu0 %v81
    %v117 = vpop.f32.mrf.mxu0
    %v118 = vadd.f32 0.0, %v117
    %v119 = vpop.f32.mrf.mxu0
    %v120 = vpop.f32.mrf.mxu0
    %v121 = vadd.f32 0.0, %v120
    %v122 = vpop.f32.mrf.mxu0
    %123 = vdwg.mxu0
    %v124 = vlaneseq
    %v125 = vshrl.u32 %v124, 7
    %v126 = vlaneseq
    %v127 = vand.u32 %v126, 127
    %vm128 = vcmp.gt.s32.totalorder %v127, %v125
    %v129 = vsel %vm128, -1e+30, 0.0
    %v130 = vld [vmem:[%s3] sm:$0x1]
    %v131 = vpack.c.bf16 %v118, %v118
    %133 = vrot.lane.b32.xlu0 %v131, 96
    %v134 = vpop.permute.xlu0 %133
    %vm135 = vcmask 64512
    %v137 = vsel %vm135, %v131, 0
    %v140 = vsel %vm135, %v134, 0
    %142 = vmatprep.subr.bf16.mxu0 0
    %143 = vmatpush1.bf16.xpose.msra.mxu0 0
    %144 = vmatprep.subr.bf16.mxu0 0
    %145 = vmatpush1.bf16.xpose.msra.mxu0 0
    %146 = vmatprep.subr.bf16.mxu0 0
    %147 = vmatpush1.bf16.xpose.msra.mxu0 0
    %148 = vmatprep.subr.bf16.mxu0 0
    %149 = vmatpush1.bf16.xpose.msra.mxu0 0
    %150 = vmatprep.subr.bf16.mxu0 0
    %151 = vmatpush1.bf16.xpose.msra.mxu0 0
    %152 = vmatprep.subr.bf16.mxu0 0
    %153 = vmatpush1.bf16.xpose.msra.mxu0 0
    %154 = vmatprep.subr.bf16.mxu0 0
    %155 = vmatpush1.bf16.xpose.msra.mxu0 0
    %156 = vmatprep.subr.bf16.mxu0 0
    %157 = vmatpush1.bf16.xpose.msra.mxu0 %v140
    %158 = vmatprep.subr.bf16.mxu0 0
    %159 = vmatpush2.bf16.xpose.msra.mxu0 0
    %160 = vmatprep.subr.bf16.mxu0 0
    %161 = vmatpush2.bf16.xpose.msra.mxu0 0
    %162 = vmatprep.subr.bf16.mxu0 0
    %163 = vmatpush2.bf16.xpose.msra.mxu0 0
    %164 = vmatprep.subr.bf16.mxu0 0
    %165 = vmatpush2.bf16.xpose.msra.mxu0 0
    %166 = vmatprep.subr.bf16.mxu0 0
    %167 = vmatpush2.bf16.xpose.msra.mxu0 0
    %168 = vmatprep.subr.bf16.mxu0 0
    %169 = vmatpush2.bf16.xpose.msra.mxu0 0
    %170 = vmatprep.subr.bf16.mxu0 0
    %171 = vmatpush2.bf16.xpose.msra.mxu0 0
    %172 = vmatprep.subr.bf16.mxu0 0
    %173 = vmatpush2.bf16.xpose.msra.mxu0 0
    %174 = vmatprep.mubr.bf16.mxu0 0
    %175 = vmatmul.mubr.bf16.gmra.mxu0 %v137
    %v176 = vpop.f32.mrf.mxu0
    %v177 = vadd.f32 0.0, %v176
    %v178 = vpop.f32.mrf.mxu0
    %v179 = vpop.f32.mrf.mxu0
    %v180 = vpop.f32.mrf.mxu0
    %181 = vdwg.mxu0
    %v182 = vmul.f32 %v177, 0.35355338
    %v183 = vadd.f32 %v182, %v129
    %v184 = vsel %vm135, %v183, -inf
    %185 = vmax.xlane.f32.xlu0 %v184
    %v186 = vpop.xlane.xlu0 %185
    %v187 = vsub.f32 %v183, %v186
    %v188 = vmul.f32 %v187, 1.442695
    %v189 = vpow.pop %v188
    %v190 = vsel %vm135, %v189, 0.0
    %191 = vadd.xlane.f32.xlu0 %v190
    %v192 = vpop.xlane.xlu0 %191
    %v193 = vrcp.pop %v192
    %v194 = vmul.f32 %v189, %v193
    %v195 = vpack.c.bf16 %v194, %v194
    %196 = vrot.lane.b32.xlu0 %v131, 64
    %v197 = vpop.permute.xlu0 %196
    %v199 = vsel %vm135, %v195, 0
    %vm201 = vcmask 1043456
    %v203 = vsel %vm201, %v197, 0
    %205 = vmatprep.subr.bf16.mxu0 0
    %206 = vmatpush1.bf16.msra.mxu0 0
    %207 = vmatprep.subr.bf16.mxu0 0
    %208 = vmatpush1.bf16.msra.mxu0 0
    %209 = vmatprep.subr.bf16.mxu0 0
    %210 = vmatpush1.bf16.msra.mxu0 0
    %211 = vmatprep.subr.bf16.mxu0 0
    %212 = vmatpush1.bf16.msra.mxu0 0
    %213 = vmatprep.subr.bf16.mxu0 0
    %214 = vmatpush1.bf16.msra.mxu0 0
    %215 = vmatprep.subr.bf16.mxu0 0
    %216 = vmatpush1.bf16.msra.mxu0 0
    %217 = vmatprep.subr.bf16.mxu0 0
    %218 = vmatpush1.bf16.msra.mxu0 0
    %219 = vmatprep.subr.bf16.mxu0 0
    %220 = vmatpush1.bf16.msra.mxu0 %v203
    %221 = vmatprep.subr.bf16.mxu0 0
    %222 = vmatpush2.bf16.msra.mxu0 0
    %223 = vmatprep.subr.bf16.mxu0 0
    %224 = vmatpush2.bf16.msra.mxu0 0
    %225 = vmatprep.subr.bf16.mxu0 0
    %226 = vmatpush2.bf16.msra.mxu0 0
    %227 = vmatprep.subr.bf16.mxu0 0
    %228 = vmatpush2.bf16.msra.mxu0 0
    %229 = vmatprep.subr.bf16.mxu0 0
    %230 = vmatpush2.bf16.msra.mxu0 0
    %231 = vmatprep.subr.bf16.mxu0 0
    %232 = vmatpush2.bf16.msra.mxu0 0
    %233 = vmatprep.subr.bf16.mxu0 0
    %234 = vmatpush2.bf16.msra.mxu0 0
    %235 = vmatprep.subr.bf16.mxu0 0
    %236 = vmatpush2.bf16.msra.mxu0 0
    %237 = vmatprep.mubr.bf16.mxu0 0
    %238 = vmatmul.mubr.bf16.gmra.mxu0 %v199
    %v239 = vpop.f32.mrf.mxu0
    %v240 = vadd.f32 0.0, %v239
    %v241 = vpop.f32.mrf.mxu0
    %v242 = vpop.f32.mrf.mxu0
    %v243 = vpop.f32.mrf.mxu0
    %244 = vdwg.mxu0
    %v245 = vld [vmem:[#allocation7] sm:$0xff]
    %v246 = vpack.c.bf16 %v245, %v245
    %v247 = vpack.c.bf16 %v240, %v240
    %248 = vrot.lane.b32.xlu0 %v131, 120
    %v249 = vpop.permute.xlu0 %248
    %250 = vrot.lane.b32.xlu0 %v131, 88
    %v251 = vpop.permute.xlu0 %250
    %v253 = vsel %vm135, %v249, 0
    %v256 = vsel %vm135, %v251, 0
    %258 = vmatprep.subr.bf16.mxu0 0
    %259 = vmatpush1.bf16.xpose.msra.mxu0 0
    %260 = vmatprep.subr.bf16.mxu0 0
    %261 = vmatpush1.bf16.xpose.msra.mxu0 0
    %262 = vmatprep.subr.bf16.mxu0 0
    %263 = vmatpush1.bf16.xpose.msra.mxu0 0
    %264 = vmatprep.subr.bf16.mxu0 0
    %265 = vmatpush1.bf16.xpose.msra.mxu0 0
    %266 = vmatprep.subr.bf16.mxu0 0
    %267 = vmatpush1.bf16.xpose.msra.mxu0 0
    %268 = vmatprep.subr.bf16.mxu0 0
    %269 = vmatpush1.bf16.xpose.msra.mxu0 0
    %270 = vmatprep.subr.bf16.mxu0 0
    %271 = vmatpush1.bf16.xpose.msra.mxu0 0
    %272 = vmatprep.subr.bf16.mxu0 0
    %273 = vmatpush1.bf16.xpose.msra.mxu0 %v256
    %274 = vmatprep.subr.bf16.mxu0 0
    %275 = vmatpush2.bf16.xpose.msra.mxu0 0
    %276 = vmatprep.subr.bf16.mxu0 0
    %277 = vmatpush2.bf16.xpose.msra.mxu0 0
    %278 = vmatprep.subr.bf16.mxu0 0
    %279 = vmatpush2.bf16.xpose.msra.mxu0 0
    %280 = vmatprep.subr.bf16.mxu0 0
    %281 = vmatpush2.bf16.xpose.msra.mxu0 0
    %282 = vmatprep.subr.bf16.mxu0 0
    %283 = vmatpush2.bf16.xpose.msra.mxu0 0
    %284 = vmatprep.subr.bf16.mxu0 0
    %285 = vmatpush2.bf16.xpose.msra.mxu0 0
    %286 = vmatprep.subr.bf16.mxu0 0
    %287 = vmatpush2.bf16.xpose.msra.mxu0 0
    %288 = vmatprep.subr.bf16.mxu0 0
    %289 = vmatpush2.bf16.xpose.msra.mxu0 0
    %290 = vmatprep.mubr.bf16.mxu0 0
    %291 = vmatmul.mubr.bf16.gmra.mxu0 %v253
    %v292 = vpop.f32.mrf.mxu0
    %v293 = vadd.f32 0.0, %v292
    %v294 = vpop.f32.mrf.mxu0
    %v295 = vpop.f32.mrf.mxu0
    %v296 = vpop.f32.mrf.mxu0
    %297 = vdwg.mxu0
    %v298 = vmul.f32 %v293, 0.35355338
    %v299 = vadd.f32 %v298, %v129
    %v300 = vsel %vm135, %v299, -inf
    %301 = vmax.xlane.f32.xlu0 %v300
    %v302 = vpop.xlane.xlu0 %301
    %v303 = vsub.f32 %v299, %v302
    %v304 = vmul.f32 %v303, 1.442695
    %v305 = vpow.pop %v304
    %v306 = vsel %vm135, %v305, 0.0
    %307 = vadd.xlane.f32.xlu0 %v306
    %v308 = vpop.xlane.xlu0 %307
    %v309 = vrcp.pop %v308
    %v310 = vmul.f32 %v305, %v309
    %v311 = vpack.c.bf16 %v310, %v310
    %312 = vrot.lane.b32.xlu0 %v131, 56
    %v313 = vpop.permute.xlu0 %312
    %v315 = vsel %vm135, %v311, 0
    %v318 = vsel %vm201, %v313, 0
    %320 = vmatprep.subr.bf16.mxu0 0
    %321 = vmatpush1.bf16.msra.mxu0 0
    %322 = vmatprep.subr.bf16.mxu0 0
    %323 = vmatpush1.bf16.msra.mxu0 0
    %324 = vmatprep.subr.bf16.mxu0 0
    %325 = vmatpush1.bf16.msra.mxu0 0
    %326 = vmatprep.subr.bf16.mxu0 0
    %327 = vmatpush1.bf16.msra.mxu0 0
    %328 = vmatprep.subr.bf16.mxu0 0
    %329 = vmatpush1.bf16.msra.mxu0 0
    %330 = vmatprep.subr.bf16.mxu0 0
    %331 = vmatpush1.bf16.msra.mxu0 0
    %332 = vmatprep.subr.bf16.mxu0 0
    %333 = vmatpush1.bf16.msra.mxu0 0
    %334 = vmatprep.subr.bf16.mxu0 0
    %335 = vmatpush1.bf16.msra.mxu0 %v318
    %336 = vmatprep.subr.bf16.mxu0 0
    %337 = vmatpush2.bf16.msra.mxu0 0
    %338 = vmatprep.subr.bf16.mxu0 0
    %339 = vmatpush2.bf16.msra.mxu0 0
    %340 = vmatprep.subr.bf16.mxu0 0
    %341 = vmatpush2.bf16.msra.mxu0 0
    %342 = vmatprep.subr.bf16.mxu0 0
    %343 = vmatpush2.bf16.msra.mxu0 0
    %344 = vmatprep.subr.bf16.mxu0 0
    %345 = vmatpush2.bf16.msra.mxu0 0
    %346 = vmatprep.subr.bf16.mxu0 0
    %347 = vmatpush2.bf16.msra.mxu0 0
    %348 = vmatprep.subr.bf16.mxu0 0
    %349 = vmatpush2.bf16.msra.mxu0 0
    %350 = vmatprep.subr.bf16.mxu0 0
    %351 = vmatpush2.bf16.msra.mxu0 0
    %352 = vmatprep.mubr.bf16.mxu0 0
    %353 = vmatmul.mubr.bf16.gmra.mxu0 %v315
    %v354 = vpop.f32.mrf.mxu0
    %v355 = vadd.f32 0.0, %v354
    %v356 = vpop.f32.mrf.mxu0
    %v357 = vpop.f32.mrf.mxu0
    %v358 = vpop.f32.mrf.mxu0
    %359 = vdwg.mxu0
    %v360 = vld [vmem:[#allocation7 + $0x8] sm:$0xff]
    %v361 = vpack.c.bf16 %v360, %v360
    %v362 = vpack.c.bf16 %v355, %v355
    %v364 = vsel %vm135, %v362, 0
    %v367 = vsel %vm201, %v361, 0
    %369 = vmatprep.subr.bf16.mxu0 0
    %370 = vmatpush1.bf16.msra.mxu0 0
    %371 = vmatprep.subr.bf16.mxu0 0
    %372 = vmatpush1.bf16.msra.mxu0 0
    %373 = vmatprep.subr.bf16.mxu0 0
    %374 = vmatpush1.bf16.msra.mxu0 0
    %375 = vmatprep.subr.bf16.mxu0 0
    %376 = vmatpush1.bf16.msra.mxu0 0
    %377 = vmatprep.subr.bf16.mxu0 0
    %378 = vmatpush1.bf16.msra.mxu0 0
    %379 = vmatprep.subr.bf16.mxu0 0
    %380 = vmatpush1.bf16.msra.mxu0 0
    %381 = vmatprep.subr.bf16.mxu0 0
    %382 = vmatpush1.bf16.msra.mxu0 0
    %383 = vmatprep.subr.bf16.mxu0 0
    %384 = vmatpush1.bf16.msra.mxu0 %v367
    %385 = vmatprep.subr.bf16.mxu0 0
    %386 = vmatpush2.bf16.msra.mxu0 0
    %387 = vmatprep.subr.bf16.mxu0 0
    %388 = vmatpush2.bf16.msra.mxu0 0
    %389 = vmatprep.subr.bf16.mxu0 0
    %390 = vmatpush2.bf16.msra.mxu0 0
    %391 = vmatprep.subr.bf16.mxu0 0
    %392 = vmatpush2.bf16.msra.mxu0 0
    %393 = vmatprep.subr.bf16.mxu0 0
    %394 = vmatpush2.bf16.msra.mxu0 0
    %395 = vmatprep.subr.bf16.mxu0 0
    %396 = vmatpush2.bf16.msra.mxu0 0
    %397 = vmatprep.subr.bf16.mxu0 0
    %398 = vmatpush2.bf16.msra.mxu0 0
    %399 = vmatprep.subr.bf16.mxu0 0
    %400 = vmatpush2.bf16.msra.mxu0 0
    %401 = vmatprep.mubr.bf16.mxu0 0
    %402 = vmatmul.mubr.bf16.gmra.mxu0 %v364
    %v403 = vpop.f32.mrf.mxu0
    %v404 = vadd.f32 0.0, %v403
    %v405 = vpop.f32.mrf.mxu0
    %v406 = vpop.f32.mrf.mxu0
    %v407 = vpop.f32.mrf.mxu0
    %408 = vdwg.mxu0
    %v410 = vsel %vm135, %v247, 0
    %v413 = vsel %vm201, %v246, 0
    %415 = vmatprep.subr.bf16.mxu0 0
    %416 = vmatpush1.bf16.msra.mxu0 0
    %417 = vmatprep.subr.bf16.mxu0 0
    %418 = vmatpush1.bf16.msra.mxu0 0
    %419 = vmatprep.subr.bf16.mxu0 0
    %420 = vmatpush1.bf16.msra.mxu0 0
    %421 = vmatprep.subr.bf16.mxu0 0
    %422 = vmatpush1.bf16.msra.mxu0 0
    %423 = vmatprep.subr.bf16.mxu0 0
    %424 = vmatpush1.bf16.msra.mxu0 0
    %425 = vmatprep.subr.bf16.mxu0 0
    %426 = vmatpush1.bf16.msra.mxu0 0
    %427 = vmatprep.subr.bf16.mxu0 0
    %428 = vmatpush1.bf16.msra.mxu0 0
    %429 = vmatprep.subr.bf16.mxu0 0
    %430 = vmatpush1.bf16.msra.mxu0 %v413
    %431 = vmatprep.subr.bf16.mxu0 0
    %432 = vmatpush2.bf16.msra.mxu0 0
    %433 = vmatprep.subr.bf16.mxu0 0
    %434 = vmatpush2.bf16.msra.mxu0 0
    %435 = vmatprep.subr.bf16.mxu0 0
    %436 = vmatpush2.bf16.msra.mxu0 0
    %437 = vmatprep.subr.bf16.mxu0 0
    %438 = vmatpush2.bf16.msra.mxu0 0
    %439 = vmatprep.subr.bf16.mxu0 0
    %440 = vmatpush2.bf16.msra.mxu0 0
    %441 = vmatprep.subr.bf16.mxu0 0
    %442 = vmatpush2.bf16.msra.mxu0 0
    %443 = vmatprep.subr.bf16.mxu0 0
    %444 = vmatpush2.bf16.msra.mxu0 0
    %445 = vmatprep.subr.bf16.mxu0 0
    %446 = vmatpush2.bf16.msra.mxu0 0
    %447 = vmatprep.mubr.bf16.mxu0 0
    %448 = vmatmul.mubr.bf16.gmra.mxu0 %v410
    %v449 = vpop.f32.mrf.mxu0
    %v450 = vadd.f32 %v404, %v449
    %v451 = vpop.f32.mrf.mxu0
    %v452 = vpop.f32.mrf.mxu0
    %v453 = vpop.f32.mrf.mxu0
    %454 = vdwg.mxu0
    %455 = vrot.lane.b32.xlu0 %v131, 112
    %v456 = vpop.permute.xlu0 %455
    %457 = vrot.lane.b32.xlu0 %v131, 80
    %v458 = vpop.permute.xlu0 %457
    %v460 = vsel %vm135, %v456, 0
    %v463 = vsel %vm135, %v458, 0
    %465 = vmatprep.subr.bf16.mxu0 0
    %466 = vmatpush1.bf16.xpose.msra.mxu0 0
    %467 = vmatprep.subr.bf16.mxu0 0
    %468 = vmatpush1.bf16.xpose.msra.mxu0 0
    %469 = vmatprep.subr.bf16.mxu0 0
    %470 = vmatpush1.bf16.xpose.msra.mxu0 0
    %471 = vmatprep.subr.bf16.mxu0 0
    %472 = vmatpush1.bf16.xpose.msra.mxu0 0
    %473 = vmatprep.subr.bf16.mxu0 0
    %474 = vmatpush1.bf16.xpose.msra.mxu0 0
    %475 = vmatprep.subr.bf16.mxu0 0
    %476 = vmatpush1.bf16.xpose.msra.mxu0 0
    %477 = vmatprep.subr.bf16.mxu0 0
    %478 = vmatpush1.bf16.xpose.msra.mxu0 0
    %479 = vmatprep.subr.bf16.mxu0 0
    %480 = vmatpush1.bf16.xpose.msra.mxu0 %v463
    %481 = vmatprep.subr.bf16.mxu0 0
    %482 = vmatpush2.bf16.xpose.msra.mxu0 0
    %483 = vmatprep.subr.bf16.mxu0 0
    %484 = vmatpush2.bf16.xpose.msra.mxu0 0
    %485 = vmatprep.subr.bf16.mxu0 0
    %486 = vmatpush2.bf16.xpose.msra.mxu0 0
    %487 = vmatprep.subr.bf16.mxu0 0
    %488 = vmatpush2.bf16.xpose.msra.mxu0 0
    %489 = vmatprep.subr.bf16.mxu0 0
    %490 = vmatpush2.bf16.xpose.msra.mxu0 0
    %491 = vmatprep.subr.bf16.mxu0 0
    %492 = vmatpush2.bf16.xpose.msra.mxu0 0
    %493 = vmatprep.subr.bf16.mxu0 0
    %494 = vmatpush2.bf16.xpose.msra.mxu0 0
    %495 = vmatprep.subr.bf16.mxu0 0
    %496 = vmatpush2.bf16.xpose.msra.mxu0 0
    %497 = vmatprep.mubr.bf16.mxu0 0
    %498 = vmatmul.mubr.bf16.gmra.mxu0 %v460
    %v499 = vpop.f32.mrf.mxu0
    %v500 = vadd.f32 0.0, %v499
    %v501 = vpop.f32.mrf.mxu0
    %v502 = vpop.f32.mrf.mxu0
    %v503 = vpop.f32.mrf.mxu0
    %504 = vdwg.mxu0
    %v505 = vmul.f32 %v500, 0.35355338
    %v506 = vadd.f32 %v505, %v129
    %v507 = vsel %vm135, %v506, -inf
    %508 = vmax.xlane.f32.xlu0 %v507
    %v509 = vpop.xlane.xlu0 %508
    %v510 = vsub.f32 %v506, %v509
    %v511 = vmul.f32 %v510, 1.442695
    %v512 = vpow.pop %v511
    %v513 = vsel %vm135, %v512, 0.0
    %514 = vadd.xlane.f32.xlu0 %v513
    %v515 = vpop.xlane.xlu0 %514
    %v516 = vrcp.pop %v515
    %v517 = vmul.f32 %v512, %v516
    %v518 = vpack.c.bf16 %v517, %v517
    %519 = vrot.lane.b32.xlu0 %v131, 48
    %v520 = vpop.permute.xlu0 %519
    %v522 = vsel %vm135, %v518, 0
    %v525 = vsel %vm201, %v520, 0
    %527 = vmatprep.subr.bf16.mxu0 0
    %528 = vmatpush1.bf16.msra.mxu0 0
    %529 = vmatprep.subr.bf16.mxu0 0
    %530 = vmatpush1.bf16.msra.mxu0 0
    %531 = vmatprep.subr.bf16.mxu0 0
    %532 = vmatpush1.bf16.msra.mxu0 0
    %533 = vmatprep.subr.bf16.mxu0 0
    %534 = vmatpush1.bf16.msra.mxu0 0
    %535 = vmatprep.subr.bf16.mxu0 0
    %536 = vmatpush1.bf16.msra.mxu0 0
    %537 = vmatprep.subr.bf16.mxu0 0
    %538 = vmatpush1.bf16.msra.mxu0 0
    %539 = vmatprep.subr.bf16.mxu0 0
    %540 = vmatpush1.bf16.msra.mxu0 0
    %541 = vmatprep.subr.bf16.mxu0 0
    %542 = vmatpush1.bf16.msra.mxu0 %v525
    %543 = vmatprep.subr.bf16.mxu0 0
    %544 = vmatpush2.bf16.msra.mxu0 0
    %545 = vmatprep.subr.bf16.mxu0 0
    %546 = vmatpush2.bf16.msra.mxu0 0
    %547 = vmatprep.subr.bf16.mxu0 0
    %548 = vmatpush2.bf16.msra.mxu0 0
    %549 = vmatprep.subr.bf16.mxu0 0
    %550 = vmatpush2.bf16.msra.mxu0 0
    %551 = vmatprep.subr.bf16.mxu0 0
    %552 = vmatpush2.bf16.msra.mxu0 0
    %553 = vmatprep.subr.bf16.mxu0 0
    %554 = vmatpush2.bf16.msra.mxu0 0
    %555 = vmatprep.subr.bf16.mxu0 0
    %556 = vmatpush2.bf16.msra.mxu0 0
    %557 = vmatprep.subr.bf16.mxu0 0
    %558 = vmatpush2.bf16.msra.mxu0 0
    %559 = vmatprep.mubr.bf16.mxu0 0
    %560 = vmatmul.mubr.bf16.gmra.mxu0 %v522
    %v561 = vpop.f32.mrf.mxu0
    %v562 = vadd.f32 0.0, %v561
    %v563 = vpop.f32.mrf.mxu0
    %v564 = vpop.f32.mrf.mxu0
    %v565 = vpop.f32.mrf.mxu0
    %566 = vdwg.mxu0
    %v567 = vld [vmem:[#allocation7 + $0x10] sm:$0xff]
    %v568 = vpack.c.bf16 %v567, %v567
    %v569 = vpack.c.bf16 %v562, %v562
    %v571 = vsel %vm135, %v569, 0
    %v574 = vsel %vm201, %v568, 0
    %576 = vmatprep.subr.bf16.mxu0 0
    %577 = vmatpush1.bf16.msra.mxu0 0
    %578 = vmatprep.subr.bf16.mxu0 0
    %579 = vmatpush1.bf16.msra.mxu0 0
    %580 = vmatprep.subr.bf16.mxu0 0
    %581 = vmatpush1.bf16.msra.mxu0 0
    %582 = vmatprep.subr.bf16.mxu0 0
    %583 = vmatpush1.bf16.msra.mxu0 0
    %584 = vmatprep.subr.bf16.mxu0 0
    %585 = vmatpush1.bf16.msra.mxu0 0
    %586 = vmatprep.subr.bf16.mxu0 0
    %587 = vmatpush1.bf16.msra.mxu0 0
    %588 = vmatprep.subr.bf16.mxu0 0
    %589 = vmatpush1.bf16.msra.mxu0 0
    %590 = vmatprep.subr.bf16.mxu0 0
    %591 = vmatpush1.bf16.msra.mxu0 %v574
    %592 = vmatprep.subr.bf16.mxu0 0
    %593 = vmatpush2.bf16.msra.mxu0 0
    %594 = vmatprep.subr.bf16.mxu0 0
    %595 = vmatpush2.bf16.msra.mxu0 0
    %596 = vmatprep.subr.bf16.mxu0 0
    %597 = vmatpush2.bf16.msra.mxu0 0
    %598 = vmatprep.subr.bf16.mxu0 0
    %599 = vmatpush2.bf16.msra.mxu0 0
    %600 = vmatprep.subr.bf16.mxu0 0
    %601 = vmatpush2.bf16.msra.mxu0 0
    %602 = vmatprep.subr.bf16.mxu0 0
    %603 = vmatpush2.bf16.msra.mxu0 0
    %604 = vmatprep.subr.bf16.mxu0 0
    %605 = vmatpush2.bf16.msra.mxu0 0
    %606 = vmatprep.subr.bf16.mxu0 0
    %607 = vmatpush2.bf16.msra.mxu0 0
    %608 = vmatprep.mubr.bf16.mxu0 0
    %609 = vmatmul.mubr.bf16.gmra.mxu0 %v571
    %v610 = vpop.f32.mrf.mxu0
    %v611 = vadd.f32 0.0, %v610
    %v612 = vpop.f32.mrf.mxu0
    %v613 = vpop.f32.mrf.mxu0
    %v614 = vpop.f32.mrf.mxu0
    %615 = vdwg.mxu0
    %v616 = vadd.f32 %v450, %v611
    %617 = vrot.lane.b32.xlu0 %v131, 104
    %v618 = vpop.permute.xlu0 %617
    %619 = vrot.lane.b32.xlu0 %v131, 72
    %v620 = vpop.permute.xlu0 %619
    %v622 = vsel %vm135, %v618, 0
    %v625 = vsel %vm135, %v620, 0
    %627 = vmatprep.subr.bf16.mxu0 0
    %628 = vmatpush1.bf16.xpose.msra.mxu0 0
    %629 = vmatprep.subr.bf16.mxu0 0
    %630 = vmatpush1.bf16.xpose.msra.mxu0 0
    %631 = vmatprep.subr.bf16.mxu0 0
    %632 = vmatpush1.bf16.xpose.msra.mxu0 0
    %633 = vmatprep.subr.bf16.mxu0 0
    %634 = vmatpush1.bf16.xpose.msra.mxu0 0
    %635 = vmatprep.subr.bf16.mxu0 0
    %636 = vmatpush1.bf16.xpose.msra.mxu0 0
    %637 = vmatprep.subr.bf16.mxu0 0
    %638 = vmatpush1.bf16.xpose.msra.mxu0 0
    %639 = vmatprep.subr.bf16.mxu0 0
    %640 = vmatpush1.bf16.xpose.msra.mxu0 0
    %641 = vmatprep.subr.bf16.mxu0 0
    %642 = vmatpush1.bf16.xpose.msra.mxu0 %v625
    %643 = vmatprep.subr.bf16.mxu0 0
    %644 = vmatpush2.bf16.xpose.msra.mxu0 0
    %645 = vmatprep.subr.bf16.mxu0 0
    %646 = vmatpush2.bf16.xpose.msra.mxu0 0
    %647 = vmatprep.subr.bf16.mxu0 0
    %648 = vmatpush2.bf16.xpose.msra.mxu0 0
    %649 = vmatprep.subr.bf16.mxu0 0
    %650 = vmatpush2.bf16.xpose.msra.mxu0 0
    %651 = vmatprep.subr.bf16.mxu0 0
    %652 = vmatpush2.bf16.xpose.msra.mxu0 0
    %653 = vmatprep.subr.bf16.mxu0 0
    %654 = vmatpush2.bf16.xpose.msra.mxu0 0
    %655 = vmatprep.subr.bf16.mxu0 0
    %656 = vmatpush2.bf16.xpose.msra.mxu0 0
    %657 = vmatprep.subr.bf16.mxu0 0
    %658 = vmatpush2.bf16.xpose.msra.mxu0 0
    %659 = vmatprep.mubr.bf16.mxu0 0
    %660 = vmatmul.mubr.bf16.gmra.mxu0 %v622
    %v661 = vpop.f32.mrf.mxu0
    %v662 = vadd.f32 0.0, %v661
    %v663 = vpop.f32.mrf.mxu0
    %v664 = vpop.f32.mrf.mxu0
    %v665 = vpop.f32.mrf.mxu0
    %666 = vdwg.mxu0
    %v667 = vmul.f32 %v662, 0.35355338
    %v668 = vadd.f32 %v667, %v129
    %v669 = vsel %vm135, %v668, -inf
    %670 = vmax.xlane.f32.xlu0 %v669
    %v671 = vpop.xlane.xlu0 %670
    %v672 = vsub.f32 %v668, %v671
    %v673 = vmul.f32 %v672, 1.442695
    %v674 = vpow.pop %v673
    %v675 = vsel %vm135, %v674, 0.0
    %676 = vadd.xlane.f32.xlu0 %v675
    %v677 = vpop.xlane.xlu0 %676
    %v678 = vrcp.pop %v677
    %v679 = vmul.f32 %v674, %v678
    %v680 = vpack.c.bf16 %v679, %v679
    %681 = vrot.lane.b32.xlu0 %v131, 40
    %v682 = vpop.permute.xlu0 %681
    %v684 = vsel %vm135, %v680, 0
    %v687 = vsel %vm201, %v682, 0
    %689 = vmatprep.subr.bf16.mxu0 0
    %690 = vmatpush1.bf16.msra.mxu0 0
    %691 = vmatprep.subr.bf16.mxu0 0
    %692 = vmatpush1.bf16.msra.mxu0 0
    %693 = vmatprep.subr.bf16.mxu0 0
    %694 = vmatpush1.bf16.msra.mxu0 0
    %695 = vmatprep.subr.bf16.mxu0 0
    %696 = vmatpush1.bf16.msra.mxu0 0
    %697 = vmatprep.subr.bf16.mxu0 0
    %698 = vmatpush1.bf16.msra.mxu0 0
    %699 = vmatprep.subr.bf16.mxu0 0
    %700 = vmatpush1.bf16.msra.mxu0 0
    %701 = vmatprep.subr.bf16.mxu0 0
    %702 = vmatpush1.bf16.msra.mxu0 0
    %703 = vmatprep.subr.bf16.mxu0 0
    %704 = vmatpush1.bf16.msra.mxu0 %v687
    %705 = vmatprep.subr.bf16.mxu0 0
    %706 = vmatpush2.bf16.msra.mxu0 0
    %707 = vmatprep.subr.bf16.mxu0 0
    %708 = vmatpush2.bf16.msra.mxu0 0
    %709 = vmatprep.subr.bf16.mxu0 0
    %710 = vmatpush2.bf16.msra.mxu0 0
    %711 = vmatprep.subr.bf16.mxu0 0
    %712 = vmatpush2.bf16.msra.mxu0 0
    %713 = vmatprep.subr.bf16.mxu0 0
    %714 = vmatpush2.bf16.msra.mxu0 0
    %715 = vmatprep.subr.bf16.mxu0 0
    %716 = vmatpush2.bf16.msra.mxu0 0
    %717 = vmatprep.subr.bf16.mxu0 0
    %718 = vmatpush2.bf16.msra.mxu0 0
    %719 = vmatprep.subr.bf16.mxu0 0
    %720 = vmatpush2.bf16.msra.mxu0 0
    %721 = vmatprep.mubr.bf16.mxu0 0
    %722 = vmatmul.mubr.bf16.gmra.mxu0 %v684
    %v723 = vpop.f32.mrf.mxu0
    %v724 = vadd.f32 0.0, %v723
    %v725 = vpop.f32.mrf.mxu0
    %v726 = vpop.f32.mrf.mxu0
    %v727 = vpop.f32.mrf.mxu0
    %728 = vdwg.mxu0
    %v729 = vld [vmem:[#allocation7 + $0x18] sm:$0xff]
    %v730 = vpack.c.bf16 %v729, %v729
    %v731 = vpack.c.bf16 %v724, %v724
    %v733 = vsel %vm135, %v731, 0
    %v736 = vsel %vm201, %v730, 0
    %738 = vmatprep.subr.bf16.mxu0 0
    %739 = vmatpush1.bf16.msra.mxu0 0
    %740 = vmatprep.subr.bf16.mxu0 0
    %741 = vmatpush1.bf16.msra.mxu0 0
    %742 = vmatprep.subr.bf16.mxu0 0
    %743 = vmatpush1.bf16.msra.mxu0 0
    %744 = vmatprep.subr.bf16.mxu0 0
    %745 = vmatpush1.bf16.msra.mxu0 0
    %746 = vmatprep.subr.bf16.mxu0 0
    %747 = vmatpush1.bf16.msra.mxu0 0
    %748 = vmatprep.subr.bf16.mxu0 0
    %749 = vmatpush1.bf16.msra.mxu0 0
    %750 = vmatprep.subr.bf16.mxu0 0
    %751 = vmatpush1.bf16.msra.mxu0 0
    %752 = vmatprep.subr.bf16.mxu0 0
    %753 = vmatpush1.bf16.msra.mxu0 %v736
    %754 = vmatprep.subr.bf16.mxu0 0
    %755 = vmatpush2.bf16.msra.mxu0 0
    %756 = vmatprep.subr.bf16.mxu0 0
    %757 = vmatpush2.bf16.msra.mxu0 0
    %758 = vmatprep.subr.bf16.mxu0 0
    %759 = vmatpush2.bf16.msra.mxu0 0
    %760 = vmatprep.subr.bf16.mxu0 0
    %761 = vmatpush2.bf16.msra.mxu0 0
    %762 = vmatprep.subr.bf16.mxu0 0
    %763 = vmatpush2.bf16.msra.mxu0 0
    %764 = vmatprep.subr.bf16.mxu0 0
    %765 = vmatpush2.bf16.msra.mxu0 0
    %766 = vmatprep.subr.bf16.mxu0 0
    %767 = vmatpush2.bf16.msra.mxu0 0
    %768 = vmatprep.subr.bf16.mxu0 0
    %769 = vmatpush2.bf16.msra.mxu0 0
    %770 = vmatprep.mubr.bf16.mxu0 0
    %771 = vmatmul.mubr.bf16.gmra.mxu0 %v733
    %v772 = vpop.f32.mrf.mxu0
    %v773 = vadd.f32 0.0, %v772
    %v774 = vpop.f32.mrf.mxu0
    %v775 = vpop.f32.mrf.mxu0
    %v776 = vpop.f32.mrf.mxu0
    %777 = vdwg.mxu0
    %v778 = vadd.f32 %v616, %v773
    %v780 = vlaneseq
    %v781 = vshrl.u32 %v780, 7
    %v782 = vsub.s32 0, %v781
    %v783 = vrot.slane %v130, %v782
    %v785 = vadd.f32 %v778, %v783
    %786 = vst.msk [vmem:[#allocation8] sm:$0xff] %vm79, %v785
    %v787 = vpack.c.bf16 %v121, %v121
    %789 = vrot.lane.b32.xlu0 %v787, 96
    %v790 = vpop.permute.xlu0 %789
    %v792 = vsel %vm135, %v787, 0
    %v795 = vsel %vm135, %v790, 0
    %797 = vmatprep.subr.bf16.mxu0 0
    %798 = vmatpush1.bf16.xpose.msra.mxu0 0
    %799 = vmatprep.subr.bf16.mxu0 0
    %800 = vmatpush1.bf16.xpose.msra.mxu0 0
    %801 = vmatprep.subr.bf16.mxu0 0
    %802 = vmatpush1.bf16.xpose.msra.mxu0 0
    %803 = vmatprep.subr.bf16.mxu0 0
    %804 = vmatpush1.bf16.xpose.msra.mxu0 0
    %805 = vmatprep.subr.bf16.mxu0 0
    %806 = vmatpush1.bf16.xpose.msra.mxu0 0
    %807 = vmatprep.subr.bf16.mxu0 0
    %808 = vmatpush1.bf16.xpose.msra.mxu0 0
    %809 = vmatprep.subr.bf16.mxu0 0
    %810 = vmatpush1.bf16.xpose.msra.mxu0 0
    %811 = vmatprep.subr.bf16.mxu0 0
    %812 = vmatpush1.bf16.xpose.msra.mxu0 %v795
    %813 = vmatprep.subr.bf16.mxu0 0
    %814 = vmatpush2.bf16.xpose.msra.mxu0 0
    %815 = vmatprep.subr.bf16.mxu0 0
    %816 = vmatpush2.bf16.xpose.msra.mxu0 0
    %817 = vmatprep.subr.bf16.mxu0 0
    %818 = vmatpush2.bf16.xpose.msra.mxu0 0
    %819 = vmatprep.subr.bf16.mxu0 0
    %820 = vmatpush2.bf16.xpose.msra.mxu0 0
    %821 = vmatprep.subr.bf16.mxu0 0
    %822 = vmatpush2.bf16.xpose.msra.mxu0 0
    %823 = vmatprep.subr.bf16.mxu0 0
    %824 = vmatpush2.bf16.xpose.msra.mxu0 0
    %825 = vmatprep.subr.bf16.mxu0 0
    %826 = vmatpush2.bf16.xpose.msra.mxu0 0
    %827 = vmatprep.subr.bf16.mxu0 0
    %828 = vmatpush2.bf16.xpose.msra.mxu0 0
    %829 = vmatprep.mubr.bf16.mxu0 0
    %830 = vmatmul.mubr.bf16.gmra.mxu0 %v792
    %v831 = vpop.f32.mrf.mxu0
    %v832 = vadd.f32 0.0, %v831
    %v833 = vpop.f32.mrf.mxu0
    %v834 = vpop.f32.mrf.mxu0
    %v835 = vpop.f32.mrf.mxu0
    %836 = vdwg.mxu0
    %v837 = vmul.f32 %v832, 0.35355338
    %v838 = vadd.f32 %v837, %v129
    %v839 = vsel %vm135, %v838, -inf
    %840 = vmax.xlane.f32.xlu0 %v839
    %v841 = vpop.xlane.xlu0 %840
    %v842 = vsub.f32 %v838, %v841
    %v843 = vmul.f32 %v842, 1.442695
    %v844 = vpow.pop %v843
    %v845 = vsel %vm135, %v844, 0.0
    %846 = vadd.xlane.f32.xlu0 %v845
    %v847 = vpop.xlane.xlu0 %846
    %v848 = vrcp.pop %v847
    %v849 = vmul.f32 %v844, %v848
    %v850 = vpack.c.bf16 %v849, %v849
    %851 = vrot.lane.b32.xlu0 %v787, 64
    %v852 = vpop.permute.xlu0 %851
    %v854 = vsel %vm135, %v850, 0
    %v857 = vsel %vm201, %v852, 0
    %859 = vmatprep.subr.bf16.mxu0 0
    %860 = vmatpush1.bf16.msra.mxu0 0
    %861 = vmatprep.subr.bf16.mxu0 0
    %862 = vmatpush1.bf16.msra.mxu0 0
    %863 = vmatprep.subr.bf16.mxu0 0
    %864 = vmatpush1.bf16.msra.mxu0 0
    %865 = vmatprep.subr.bf16.mxu0 0
    %866 = vmatpush1.bf16.msra.mxu0 0
    %867 = vmatprep.subr.bf16.mxu0 0
    %868 = vmatpush1.bf16.msra.mxu0 0
    %869 = vmatprep.subr.bf16.mxu0 0
    %870 = vmatpush1.bf16.msra.mxu0 0
    %871 = vmatprep.subr.bf16.mxu0 0
    %872 = vmatpush1.bf16.msra.mxu0 0
    %873 = vmatprep.subr.bf16.mxu0 0
    %874 = vmatpush1.bf16.msra.mxu0 %v857
    %875 = vmatprep.subr.bf16.mxu0 0
    %876 = vmatpush2.bf16.msra.mxu0 0
    %877 = vmatprep.subr.bf16.mxu0 0
    %878 = vmatpush2.bf16.msra.mxu0 0
    %879 = vmatprep.subr.bf16.mxu0 0
    %880 = vmatpush2.bf16.msra.mxu0 0
    %881 = vmatprep.subr.bf16.mxu0 0
    %882 = vmatpush2.bf16.msra.mxu0 0
    %883 = vmatprep.subr.bf16.mxu0 0
    %884 = vmatpush2.bf16.msra.mxu0 0
    %885 = vmatprep.subr.bf16.mxu0 0
    %886 = vmatpush2.bf16.msra.mxu0 0
    %887 = vmatprep.subr.bf16.mxu0 0
    %888 = vmatpush2.bf16.msra.mxu0 0
    %889 = vmatprep.subr.bf16.mxu0 0
    %890 = vmatpush2.bf16.msra.mxu0 0
    %891 = vmatprep.mubr.bf16.mxu0 0
    %892 = vmatmul.mubr.bf16.gmra.mxu0 %v854
    %v893 = vpop.f32.mrf.mxu0
    %v894 = vadd.f32 0.0, %v893
    %v895 = vpop.f32.mrf.mxu0
    %v896 = vpop.f32.mrf.mxu0
    %v897 = vpop.f32.mrf.mxu0
    %898 = vdwg.mxu0
    %v899 = vld [vmem:[#allocation7] sm:$0xff]
    %v900 = vpack.c.bf16 %v899, %v899
    %v901 = vpack.c.bf16 %v894, %v894
    %902 = vrot.lane.b32.xlu0 %v787, 120
    %v903 = vpop.permute.xlu0 %902
    %904 = vrot.lane.b32.xlu0 %v787, 88
    %v905 = vpop.permute.xlu0 %904
    %v907 = vsel %vm135, %v903, 0
    %v910 = vsel %vm135, %v905, 0
    %912 = vmatprep.subr.bf16.mxu0 0
    %913 = vmatpush1.bf16.xpose.msra.mxu0 0
    %914 = vmatprep.subr.bf16.mxu0 0
    %915 = vmatpush1.bf16.xpose.msra.mxu0 0
    %916 = vmatprep.subr.bf16.mxu0 0
    %917 = vmatpush1.bf16.xpose.msra.mxu0 0
    %918 = vmatprep.subr.bf16.mxu0 0
    %919 = vmatpush1.bf16.xpose.msra.mxu0 0
    %920 = vmatprep.subr.bf16.mxu0 0
    %921 = vmatpush1.bf16.xpose.msra.mxu0 0
    %922 = vmatprep.subr.bf16.mxu0 0
    %923 = vmatpush1.bf16.xpose.msra.mxu0 0
    %924 = vmatprep.subr.bf16.mxu0 0
    %925 = vmatpush1.bf16.xpose.msra.mxu0 0
    %926 = vmatprep.subr.bf16.mxu0 0
    %927 = vmatpush1.bf16.xpose.msra.mxu0 %v910
    %928 = vmatprep.subr.bf16.mxu0 0
    %929 = vmatpush2.bf16.xpose.msra.mxu0 0
    %930 = vmatprep.subr.bf16.mxu0 0
    %931 = vmatpush2.bf16.xpose.msra.mxu0 0
    %932 = vmatprep.subr.bf16.mxu0 0
    %933 = vmatpush2.bf16.xpose.msra.mxu0 0
    %934 = vmatprep.subr.bf16.mxu0 0
    %935 = vmatpush2.bf16.xpose.msra.mxu0 0
    %936 = vmatprep.subr.bf16.mxu0 0
    %937 = vmatpush2.bf16.xpose.msra.mxu0 0
    %938 = vmatprep.subr.bf16.mxu0 0
    %939 = vmatpush2.bf16.xpose.msra.mxu0 0
    %940 = vmatprep.subr.bf16.mxu0 0
    %941 = vmatpush2.bf16.xpose.msra.mxu0 0
    %942 = vmatprep.subr.bf16.mxu0 0
    %943 = vmatpush2.bf16.xpose.msra.mxu0 0
    %944 = vmatprep.mubr.bf16.mxu0 0
    %945 = vmatmul.mubr.bf16.gmra.mxu0 %v907
    %v946 = vpop.f32.mrf.mxu0
    %v947 = vadd.f32 0.0, %v946
    %v948 = vpop.f32.mrf.mxu0
    %v949 = vpop.f32.mrf.mxu0
    %v950 = vpop.f32.mrf.mxu0
    %951 = vdwg.mxu0
    %v952 = vmul.f32 %v947, 0.35355338
    %v953 = vadd.f32 %v952, %v129
    %v954 = vsel %vm135, %v953, -inf
    %955 = vmax.xlane.f32.xlu0 %v954
    %v956 = vpop.xlane.xlu0 %955
    %v957 = vsub.f32 %v953, %v956
    %v958 = vmul.f32 %v957, 1.442695
    %v959 = vpow.pop %v958
    %v960 = vsel %vm135, %v959, 0.0
    %961 = vadd.xlane.f32.xlu0 %v960
    %v962 = vpop.xlane.xlu0 %961
    %v963 = vrcp.pop %v962
    %v964 = vmul.f32 %v959, %v963
    %v965 = vpack.c.bf16 %v964, %v964
    %966 = vrot.lane.b32.xlu0 %v787, 56
    %v967 = vpop.permute.xlu0 %966
    %v969 = vsel %vm135, %v965, 0
    %v972 = vsel %vm201, %v967, 0
    %974 = vmatprep.subr.bf16.mxu0 0
    %975 = vmatpush1.bf16.msra.mxu0 0
    %976 = vmatprep.subr.bf16.mxu0 0
    %977 = vmatpush1.bf16.msra.mxu0 0
    %978 = vmatprep.subr.bf16.mxu0 0
    %979 = vmatpush1.bf16.msra.mxu0 0
    %980 = vmatprep.subr.bf16.mxu0 0
    %981 = vmatpush1.bf16.msra.mxu0 0
    %982 = vmatprep.subr.bf16.mxu0 0
    %983 = vmatpush1.bf16.msra.mxu0 0
    %984 = vmatprep.subr.bf16.mxu0 0
    %985 = vmatpush1.bf16.msra.mxu0 0
    %986 = vmatprep.subr.bf16.mxu0 0
    %987 = vmatpush1.bf16.msra.mxu0 0
    %988 = vmatprep.subr.bf16.mxu0 0
    %989 = vmatpush1.bf16.msra.mxu0 %v972
    %990 = vmatprep.subr.bf16.mxu0 0
    %991 = vmatpush2.bf16.msra.mxu0 0
    %992 = vmatprep.subr.bf16.mxu0 0
    %993 = vmatpush2.bf16.msra.mxu0 0
    %994 = vmatprep.subr.bf16.mxu0 0
    %995 = vmatpush2.bf16.msra.mxu0 0
    %996 = vmatprep.subr.bf16.mxu0 0
    %997 = vmatpush2.bf16.msra.mxu0 0
    %998 = vmatprep.subr.bf16.mxu0 0
    %999 = vmatpush2.bf16.msra.mxu0 0
    %1000 = vmatprep.subr.bf16.mxu0 0
    %1001 = vmatpush2.bf16.msra.mxu0 0
    %1002 = vmatprep.subr.bf16.mxu0 0
    %1003 = vmatpush2.bf16.msra.mxu0 0
    %1004 = vmatprep.subr.bf16.mxu0 0
    %1005 = vmatpush2.bf16.msra.mxu0 0
    %1006 = vmatprep.mubr.bf16.mxu0 0
    %1007 = vmatmul.mubr.bf16.gmra.mxu0 %v969
    %v1008 = vpop.f32.mrf.mxu0
    %v1009 = vadd.f32 0.0, %v1008
    %v1010 = vpop.f32.mrf.mxu0
    %v1011 = vpop.f32.mrf.mxu0
    %v1012 = vpop.f32.mrf.mxu0
    %1013 = vdwg.mxu0
    %v1014 = vld [vmem:[#allocation7 + $0x8] sm:$0xff]
    %v1015 = vpack.c.bf16 %v1014, %v1014
    %v1016 = vpack.c.bf16 %v1009, %v1009
    %v1018 = vsel %vm135, %v1016, 0
    %v1021 = vsel %vm201, %v1015, 0
    %1023 = vmatprep.subr.bf16.mxu0 0
    %1024 = vmatpush1.bf16.msra.mxu0 0
    %1025 = vmatprep.subr.bf16.mxu0 0
    %1026 = vmatpush1.bf16.msra.mxu0 0
    %1027 = vmatprep.subr.bf16.mxu0 0
    %1028 = vmatpush1.bf16.msra.mxu0 0
    %1029 = vmatprep.subr.bf16.mxu0 0
    %1030 = vmatpush1.bf16.msra.mxu0 0
    %1031 = vmatprep.subr.bf16.mxu0 0
    %1032 = vmatpush1.bf16.msra.mxu0 0
    %1033 = vmatprep.subr.bf16.mxu0 0
    %1034 = vmatpush1.bf16.msra.mxu0 0
    %1035 = vmatprep.subr.bf16.mxu0 0
    %1036 = vmatpush1.bf16.msra.mxu0 0
    %1037 = vmatprep.subr.bf16.mxu0 0
    %1038 = vmatpush1.bf16.msra.mxu0 %v1021
    %1039 = vmatprep.subr.bf16.mxu0 0
    %1040 = vmatpush2.bf16.msra.mxu0 0
    %1041 = vmatprep.subr.bf16.mxu0 0
    %1042 = vmatpush2.bf16.msra.mxu0 0
    %1043 = vmatprep.subr.bf16.mxu0 0
    %1044 = vmatpush2.bf16.msra.mxu0 0
    %1045 = vmatprep.subr.bf16.mxu0 0
    %1046 = vmatpush2.bf16.msra.mxu0 0
    %1047 = vmatprep.subr.bf16.mxu0 0
    %1048 = vmatpush2.bf16.msra.mxu0 0
    %1049 = vmatprep.subr.bf16.mxu0 0
    %1050 = vmatpush2.bf16.msra.mxu0 0
    %1051 = vmatprep.subr.bf16.mxu0 0
    %1052 = vmatpush2.bf16.msra.mxu0 0
    %1053 = vmatprep.subr.bf16.mxu0 0
    %1054 = vmatpush2.bf16.msra.mxu0 0
    %1055 = vmatprep.mubr.bf16.mxu0 0
    %1056 = vmatmul.mubr.bf16.gmra.mxu0 %v1018
    %v1057 = vpop.f32.mrf.mxu0
    %v1058 = vadd.f32 0.0, %v1057
    %v1059 = vpop.f32.mrf.mxu0
    %v1060 = vpop.f32.mrf.mxu0
    %v1061 = vpop.f32.mrf.mxu0
    %1062 = vdwg.mxu0
    %v1064 = vsel %vm135, %v901, 0
    %v1067 = vsel %vm201, %v900, 0
    %1069 = vmatprep.subr.bf16.mxu0 0
    %1070 = vmatpush1.bf16.msra.mxu0 0
    %1071 = vmatprep.subr.bf16.mxu0 0
    %1072 = vmatpush1.bf16.msra.mxu0 0
    %1073 = vmatprep.subr.bf16.mxu0 0
    %1074 = vmatpush1.bf16.msra.mxu0 0
    %1075 = vmatprep.subr.bf16.mxu0 0
    %1076 = vmatpush1.bf16.msra.mxu0 0
    %1077 = vmatprep.subr.bf16.mxu0 0
    %1078 = vmatpush1.bf16.msra.mxu0 0
    %1079 = vmatprep.subr.bf16.mxu0 0
    %1080 = vmatpush1.bf16.msra.mxu0 0
    %1081 = vmatprep.subr.bf16.mxu0 0
    %1082 = vmatpush1.bf16.msra.mxu0 0
    %1083 = vmatprep.subr.bf16.mxu0 0
    %1084 = vmatpush1.bf16.msra.mxu0 %v1067
    %1085 = vmatprep.subr.bf16.mxu0 0
    %1086 = vmatpush2.bf16.msra.mxu0 0
    %1087 = vmatprep.subr.bf16.mxu0 0
    %1088 = vmatpush2.bf16.msra.mxu0 0
    %1089 = vmatprep.subr.bf16.mxu0 0
    %1090 = vmatpush2.bf16.msra.mxu0 0
    %1091 = vmatprep.subr.bf16.mxu0 0
    %1092 = vmatpush2.bf16.msra.mxu0 0
    %1093 = vmatprep.subr.bf16.mxu0 0
    %1094 = vmatpush2.bf16.msra.mxu0 0
    %1095 = vmatprep.subr.bf16.mxu0 0
    %1096 = vmatpush2.bf16.msra.mxu0 0
    %1097 = vmatprep.subr.bf16.mxu0 0
    %1098 = vmatpush2.bf16.msra.mxu0 0
    %1099 = vmatprep.subr.bf16.mxu0 0
    %1100 = vmatpush2.bf16.msra.mxu0 0
    %1101 = vmatprep.mubr.bf16.mxu0 0
    %1102 = vmatmul.mubr.bf16.gmra.mxu0 %v1064
    %v1103 = vpop.f32.mrf.mxu0
    %v1104 = vadd.f32 %v1058, %v1103
    %v1105 = vpop.f32.mrf.mxu0
    %v1106 = vpop.f32.mrf.mxu0
    %v1107 = vpop.f32.mrf.mxu0
    %1108 = vdwg.mxu0
    %1109 = vrot.lane.b32.xlu0 %v787, 112
    %v1110 = vpop.permute.xlu0 %1109
    %1111 = vrot.lane.b32.xlu0 %v787, 80
    %v1112 = vpop.permute.xlu0 %1111
    %v1114 = vsel %vm135, %v1110, 0
    %v1117 = vsel %vm135, %v1112, 0
    %1119 = vmatprep.subr.bf16.mxu0 0
    %1120 = vmatpush1.bf16.xpose.msra.mxu0 0
    %1121 = vmatprep.subr.bf16.mxu0 0
    %1122 = vmatpush1.bf16.xpose.msra.mxu0 0
    %1123 = vmatprep.subr.bf16.mxu0 0
    %1124 = vmatpush1.bf16.xpose.msra.mxu0 0
    %1125 = vmatprep.subr.bf16.mxu0 0
    %1126 = vmatpush1.bf16.xpose.msra.mxu0 0
    %1127 = vmatprep.subr.bf16.mxu0 0
    %1128 = vmatpush1.bf16.xpose.msra.mxu0 0
    %1129 = vmatprep.subr.bf16.mxu0 0
    %1130 = vmatpush1.bf16.xpose.msra.mxu0 0
    %1131 = vmatprep.subr.bf16.mxu0 0
    %1132 = vmatpush1.bf16.xpose.msra.mxu0 0
    %1133 = vmatprep.subr.bf16.mxu0 0
    %1134 = vmatpush1.bf16.xpose.msra.mxu0 %v1117
    %1135 = vmatprep.subr.bf16.mxu0 0
    %1136 = vmatpush2.bf16.xpose.msra.mxu0 0
    %1137 = vmatprep.subr.bf16.mxu0 0
    %1138 = vmatpush2.bf16.xpose.msra.mxu0 0
    %1139 = vmatprep.subr.bf16.mxu0 0
    %1140 = vmatpush2.bf16.xpose.msra.mxu0 0
    %1141 = vmatprep.subr.bf16.mxu0 0
    %1142 = vmatpush2.bf16.xpose.msra.mxu0 0
    %1143 = vmatprep.subr.bf16.mxu0 0
    %1144 = vmatpush2.bf16.xpose.msra.mxu0 0
    %1145 = vmatprep.subr.bf16.mxu0 0
    %1146 = vmatpush2.bf16.xpose.msra.mxu0 0
    %1147 = vmatprep.subr.bf16.mxu0 0
    %1148 = vmatpush2.bf16.xpose.msra.mxu0 0
    %1149 = vmatprep.subr.bf16.mxu0 0
    %1150 = vmatpush2.bf16.xpose.msra.mxu0 0
    %1151 = vmatprep.mubr.bf16.mxu0 0
    %1152 = vmatmul.mubr.bf16.gmra.mxu0 %v1114
    %v1153 = vpop.f32.mrf.mxu0
    %v1154 = vadd.f32 0.0, %v1153
    %v1155 = vpop.f32.mrf.mxu0
    %v1156 = vpop.f32.mrf.mxu0
    %v1157 = vpop.f32.mrf.mxu0
    %1158 = vdwg.mxu0
    %v1159 = vmul.f32 %v1154, 0.35355338
    %v1160 = vadd.f32 %v1159, %v129
    %v1161 = vsel %vm135, %v1160, -inf
    %1162 = vmax.xlane.f32.xlu0 %v1161
    %v1163 = vpop.xlane.xlu0 %1162
    %v1164 = vsub.f32 %v1160, %v1163
    %v1165 = vmul.f32 %v1164, 1.442695
    %v1166 = vpow.pop %v1165
    %v1167 = vsel %vm135, %v1166, 0.0
    %1168 = vadd.xlane.f32.xlu0 %v1167
    %v1169 = vpop.xlane.xlu0 %1168
    %v1170 = vrcp.pop %v1169
    %v1171 = vmul.f32 %v1166, %v1170
    %v1172 = vpack.c.bf16 %v1171, %v1171
    %1173 = vrot.lane.b32.xlu0 %v787, 48
    %v1174 = vpop.permute.xlu0 %1173
    %v1176 = vsel %vm135, %v1172, 0
    %v1179 = vsel %vm201, %v1174, 0
    %1181 = vmatprep.subr.bf16.mxu0 0
    %1182 = vmatpush1.bf16.msra.mxu0 0
    %1183 = vmatprep.subr.bf16.mxu0 0
    %1184 = vmatpush1.bf16.msra.mxu0 0
    %1185 = vmatprep.subr.bf16.mxu0 0
    %1186 = vmatpush1.bf16.msra.mxu0 0
    %1187 = vmatprep.subr.bf16.mxu0 0
    %1188 = vmatpush1.bf16.msra.mxu0 0
    %1189 = vmatprep.subr.bf16.mxu0 0
    %1190 = vmatpush1.bf16.msra.mxu0 0
    %1191 = vmatprep.subr.bf16.mxu0 0
    %1192 = vmatpush1.bf16.msra.mxu0 0
    %1193 = vmatprep.subr.bf16.mxu0 0
    %1194 = vmatpush1.bf16.msra.mxu0 0
    %1195 = vmatprep.subr.bf16.mxu0 0
    %1196 = vmatpush1.bf16.msra.mxu0 %v1179
    %1197 = vmatprep.subr.bf16.mxu0 0
    %1198 = vmatpush2.bf16.msra.mxu0 0
    %1199 = vmatprep.subr.bf16.mxu0 0
    %1200 = vmatpush2.bf16.msra.mxu0 0
    %1201 = vmatprep.subr.bf16.mxu0 0
    %1202 = vmatpush2.bf16.msra.mxu0 0
    %1203 = vmatprep.subr.bf16.mxu0 0
    %1204 = vmatpush2.bf16.msra.mxu0 0
    %1205 = vmatprep.subr.bf16.mxu0 0
    %1206 = vmatpush2.bf16.msra.mxu0 0
    %1207 = vmatprep.subr.bf16.mxu0 0
    %1208 = vmatpush2.bf16.msra.mxu0 0
    %1209 = vmatprep.subr.bf16.mxu0 0
    %1210 = vmatpush2.bf16.msra.mxu0 0
    %1211 = vmatprep.subr.bf16.mxu0 0
    %1212 = vmatpush2.bf16.msra.mxu0 0
    %1213 = vmatprep.mubr.bf16.mxu0 0
    %1214 = vmatmul.mubr.bf16.gmra.mxu0 %v1176
    %v1215 = vpop.f32.mrf.mxu0
    %v1216 = vadd.f32 0.0, %v1215
    %v1217 = vpop.f32.mrf.mxu0
    %v1218 = vpop.f32.mrf.mxu0
    %v1219 = vpop.f32.mrf.mxu0
    %1220 = vdwg.mxu0
    %v1221 = vld [vmem:[#allocation7 + $0x10] sm:$0xff]
    %v1222 = vpack.c.bf16 %v1221, %v1221
    %v1223 = vpack.c.bf16 %v1216, %v1216
    %v1225 = vsel %vm135, %v1223, 0
    %v1228 = vsel %vm201, %v1222, 0
    %1230 = vmatprep.subr.bf16.mxu0 0
    %1231 = vmatpush1.bf16.msra.mxu0 0
    %1232 = vmatprep.subr.bf16.mxu0 0
    %1233 = vmatpush1.bf16.msra.mxu0 0
    %1234 = vmatprep.subr.bf16.mxu0 0
    %1235 = vmatpush1.bf16.msra.mxu0 0
    %1236 = vmatprep.subr.bf16.mxu0 0
    %1237 = vmatpush1.bf16.msra.mxu0 0
    %1238 = vmatprep.subr.bf16.mxu0 0
    %1239 = vmatpush1.bf16.msra.mxu0 0
    %1240 = vmatprep.subr.bf16.mxu0 0
    %1241 = vmatpush1.bf16.msra.mxu0 0
    %1242 = vmatprep.subr.bf16.mxu0 0
    %1243 = vmatpush1.bf16.msra.mxu0 0
    %1244 = vmatprep.subr.bf16.mxu0 0
    %1245 = vmatpush1.bf16.msra.mxu0 %v1228
    %1246 = vmatprep.subr.bf16.mxu0 0
    %1247 = vmatpush2.bf16.msra.mxu0 0
    %1248 = vmatprep.subr.bf16.mxu0 0
    %1249 = vmatpush2.bf16.msra.mxu0 0
    %1250 = vmatprep.subr.bf16.mxu0 0
    %1251 = vmatpush2.bf16.msra.mxu0 0
    %1252 = vmatprep.subr.bf16.mxu0 0
    %1253 = vmatpush2.bf16.msra.mxu0 0
    %1254 = vmatprep.subr.bf16.mxu0 0
    %1255 = vmatpush2.bf16.msra.mxu0 0
    %1256 = vmatprep.subr.bf16.mxu0 0
    %1257 = vmatpush2.bf16.msra.mxu0 0
    %1258 = vmatprep.subr.bf16.mxu0 0
    %1259 = vmatpush2.bf16.msra.mxu0 0
    %1260 = vmatprep.subr.bf16.mxu0 0
    %1261 = vmatpush2.bf16.msra.mxu0 0
    %1262 = vmatprep.mubr.bf16.mxu0 0
    %1263 = vmatmul.mubr.bf16.gmra.mxu0 %v1225
    %v1264 = vpop.f32.mrf.mxu0
    %v1265 = vadd.f32 0.0, %v1264
    %v1266 = vpop.f32.mrf.mxu0
    %v1267 = vpop.f32.mrf.mxu0
    %v1268 = vpop.f32.mrf.mxu0
    %1269 = vdwg.mxu0
    %v1270 = vadd.f32 %v1104, %v1265
    %1271 = vrot.lane.b32.xlu0 %v787, 104
    %v1272 = vpop.permute.xlu0 %1271
    %1273 = vrot.lane.b32.xlu0 %v787, 72
    %v1274 = vpop.permute.xlu0 %1273
    %v1276 = vsel %vm135, %v1272, 0
    %v1279 = vsel %vm135, %v1274, 0
    %1281 = vmatprep.subr.bf16.mxu0 0
    %1282 = vmatpush1.bf16.xpose.msra.mxu0 0
    %1283 = vmatprep.subr.bf16.mxu0 0
    %1284 = vmatpush1.bf16.xpose.msra.mxu0 0
    %1285 = vmatprep.subr.bf16.mxu0 0
    %1286 = vmatpush1.bf16.xpose.msra.mxu0 0
    %1287 = vmatprep.subr.bf16.mxu0 0
    %1288 = vmatpush1.bf16.xpose.msra.mxu0 0
    %1289 = vmatprep.subr.bf16.mxu0 0
    %1290 = vmatpush1.bf16.xpose.msra.mxu0 0
    %1291 = vmatprep.subr.bf16.mxu0 0
    %1292 = vmatpush1.bf16.xpose.msra.mxu0 0
    %1293 = vmatprep.subr.bf16.mxu0 0
    %1294 = vmatpush1.bf16.xpose.msra.mxu0 0
    %1295 = vmatprep.subr.bf16.mxu0 0
    %1296 = vmatpush1.bf16.xpose.msra.mxu0 %v1279
    %1297 = vmatprep.subr.bf16.mxu0 0
    %1298 = vmatpush2.bf16.xpose.msra.mxu0 0
    %1299 = vmatprep.subr.bf16.mxu0 0
    %1300 = vmatpush2.bf16.xpose.msra.mxu0 0
    %1301 = vmatprep.subr.bf16.mxu0 0
    %1302 = vmatpush2.bf16.xpose.msra.mxu0 0
    %1303 = vmatprep.subr.bf16.mxu0 0
    %1304 = vmatpush2.bf16.xpose.msra.mxu0 0
    %1305 = vmatprep.subr.bf16.mxu0 0
    %1306 = vmatpush2.bf16.xpose.msra.mxu0 0
    %1307 = vmatprep.subr.bf16.mxu0 0
    %1308 = vmatpush2.bf16.xpose.msra.mxu0 0
    %1309 = vmatprep.subr.bf16.mxu0 0
    %1310 = vmatpush2.bf16.xpose.msra.mxu0 0
    %1311 = vmatprep.subr.bf16.mxu0 0
    %1312 = vmatpush2.bf16.xpose.msra.mxu0 0
    %1313 = vmatprep.mubr.bf16.mxu0 0
    %1314 = vmatmul.mubr.bf16.gmra.mxu0 %v1276
    %v1315 = vpop.f32.mrf.mxu0
    %v1316 = vadd.f32 0.0, %v1315
    %v1317 = vpop.f32.mrf.mxu0
    %v1318 = vpop.f32.mrf.mxu0
    %v1319 = vpop.f32.mrf.mxu0
    %1320 = vdwg.mxu0
    %v1321 = vmul.f32 %v1316, 0.35355338
    %v1322 = vadd.f32 %v1321, %v129
    %v1323 = vsel %vm135, %v1322, -inf
    %1324 = vmax.xlane.f32.xlu0 %v1323
    %v1325 = vpop.xlane.xlu0 %1324
    %v1326 = vsub.f32 %v1322, %v1325
    %v1327 = vmul.f32 %v1326, 1.442695
    %v1328 = vpow.pop %v1327
    %v1329 = vsel %vm135, %v1328, 0.0
    %1330 = vadd.xlane.f32.xlu0 %v1329
    %v1331 = vpop.xlane.xlu0 %1330
    %v1332 = vrcp.pop %v1331
    %v1333 = vmul.f32 %v1328, %v1332
    %v1334 = vpack.c.bf16 %v1333, %v1333
    %1335 = vrot.lane.b32.xlu0 %v787, 40
    %v1336 = vpop.permute.xlu0 %1335
    %v1338 = vsel %vm135, %v1334, 0
    %v1341 = vsel %vm201, %v1336, 0
    %1343 = vmatprep.subr.bf16.mxu0 0
    %1344 = vmatpush1.bf16.msra.mxu0 0
    %1345 = vmatprep.subr.bf16.mxu0 0
    %1346 = vmatpush1.bf16.msra.mxu0 0
    %1347 = vmatprep.subr.bf16.mxu0 0
    %1348 = vmatpush1.bf16.msra.mxu0 0
    %1349 = vmatprep.subr.bf16.mxu0 0
    %1350 = vmatpush1.bf16.msra.mxu0 0
    %1351 = vmatprep.subr.bf16.mxu0 0
    %1352 = vmatpush1.bf16.msra.mxu0 0
    %1353 = vmatprep.subr.bf16.mxu0 0
    %1354 = vmatpush1.bf16.msra.mxu0 0
    %1355 = vmatprep.subr.bf16.mxu0 0
    %1356 = vmatpush1.bf16.msra.mxu0 0
    %1357 = vmatprep.subr.bf16.mxu0 0
    %1358 = vmatpush1.bf16.msra.mxu0 %v1341
    %1359 = vmatprep.subr.bf16.mxu0 0
    %1360 = vmatpush2.bf16.msra.mxu0 0
    %1361 = vmatprep.subr.bf16.mxu0 0
    %1362 = vmatpush2.bf16.msra.mxu0 0
    %1363 = vmatprep.subr.bf16.mxu0 0
    %1364 = vmatpush2.bf16.msra.mxu0 0
    %1365 = vmatprep.subr.bf16.mxu0 0
    %1366 = vmatpush2.bf16.msra.mxu0 0
    %1367 = vmatprep.subr.bf16.mxu0 0
    %1368 = vmatpush2.bf16.msra.mxu0 0
    %1369 = vmatprep.subr.bf16.mxu0 0
    %1370 = vmatpush2.bf16.msra.mxu0 0
    %1371 = vmatprep.subr.bf16.mxu0 0
    %1372 = vmatpush2.bf16.msra.mxu0 0
    %1373 = vmatprep.subr.bf16.mxu0 0
    %1374 = vmatpush2.bf16.msra.mxu0 0
    %1375 = vmatprep.mubr.bf16.mxu0 0
    %1376 = vmatmul.mubr.bf16.gmra.mxu0 %v1338
    %v1377 = vpop.f32.mrf.mxu0
    %v1378 = vadd.f32 0.0, %v1377
    %v1379 = vpop.f32.mrf.mxu0
    %v1380 = vpop.f32.mrf.mxu0
    %v1381 = vpop.f32.mrf.mxu0
    %1382 = vdwg.mxu0
    %v1383 = vld [vmem:[#allocation7 + $0x18] sm:$0xff]
    %v1384 = vpack.c.bf16 %v1383, %v1383
    %v1385 = vpack.c.bf16 %v1378, %v1378
    %v1387 = vsel %vm135, %v1385, 0
    %v1390 = vsel %vm201, %v1384, 0
    %1392 = vmatprep.subr.bf16.mxu0 0
    %1393 = vmatpush1.bf16.msra.mxu0 0
    %1394 = vmatprep.subr.bf16.mxu0 0
    %1395 = vmatpush1.bf16.msra.mxu0 0
    %1396 = vmatprep.subr.bf16.mxu0 0
    %1397 = vmatpush1.bf16.msra.mxu0 0
    %1398 = vmatprep.subr.bf16.mxu0 0
    %1399 = vmatpush1.bf16.msra.mxu0 0
    %1400 = vmatprep.subr.bf16.mxu0 0
    %1401 = vmatpush1.bf16.msra.mxu0 0
    %1402 = vmatprep.subr.bf16.mxu0 0
    %1403 = vmatpush1.bf16.msra.mxu0 0
    %1404 = vmatprep.subr.bf16.mxu0 0
    %1405 = vmatpush1.bf16.msra.mxu0 0
    %1406 = vmatprep.subr.bf16.mxu0 0
    %1407 = vmatpush1.bf16.msra.mxu0 %v1390
    %1408 = vmatprep.subr.bf16.mxu0 0
    %1409 = vmatpush2.bf16.msra.mxu0 0
    %1410 = vmatprep.subr.bf16.mxu0 0
    %1411 = vmatpush2.bf16.msra.mxu0 0
    %1412 = vmatprep.subr.bf16.mxu0 0
    %1413 = vmatpush2.bf16.msra.mxu0 0
    %1414 = vmatprep.subr.bf16.mxu0 0
    %1415 = vmatpush2.bf16.msra.mxu0 0
    %1416 = vmatprep.subr.bf16.mxu0 0
    %1417 = vmatpush2.bf16.msra.mxu0 0
    %1418 = vmatprep.subr.bf16.mxu0 0
    %1419 = vmatpush2.bf16.msra.mxu0 0
    %1420 = vmatprep.subr.bf16.mxu0 0
    %1421 = vmatpush2.bf16.msra.mxu0 0
    %1422 = vmatprep.subr.bf16.mxu0 0
    %1423 = vmatpush2.bf16.msra.mxu0 0
    %1424 = vmatprep.mubr.bf16.mxu0 0
    %1425 = vmatmul.mubr.bf16.gmra.mxu0 %v1387
    %v1426 = vpop.f32.mrf.mxu0
    %v1427 = vadd.f32 0.0, %v1426
    %v1428 = vpop.f32.mrf.mxu0
    %v1429 = vpop.f32.mrf.mxu0
    %v1430 = vpop.f32.mrf.mxu0
    %1431 = vdwg.mxu0
    %v1432 = vadd.f32 %v1270, %v1427
    %v1433 = vadd.f32 %v1432, %v783
    %1434 = vst.msk [vmem:[#allocation8 + $0x8] sm:$0xff] %vm79, %v1433
    // Predicated region
    $region30: #{multi_head_attention.1} parent=1 // pred_check
      _
    $region31: #{multi_head_attention.1} parent=1 // pred_check_branch
      %1436 = sbr.rel (0) target = $region33
    $region32: #{multi_head_attention.1} parent=1 // pred_region
      %s1438 = ssub.s32 256, 256
      %1439 = vsyncadd [#allocation4], %s1438
      %s1440 = sshll.u32 [#allocation8], 4
      %s1441 = int_to_ptr.vmem [resolvable:$true] %s1440
      %1446 = dma.vmem_to_hbm [thread:$0]  %s1441, 256, %s4, [#allocation4], 128, 128, 8
    $region33: #{multi_head_attention.1} parent=1 // pred_fallthru
      _
    // Predicated region
    $region34: #{multi_head_attention.1} parent=1 // pred_check
      _
    $region35: #{multi_head_attention.1} parent=1 // pred_check_branch
      %1448 = sbr.rel (0) target = $region37
    $region36: #{multi_head_attention.1} parent=1 // pred_region
      %1449 = dma.done [#allocation4], 256
    $region37: #{multi_head_attention.1} parent=1 // pred_fallthru
      _
    %1450 = vsyncpa [#allocation3], 1
    %1451 = vsyncpa [#allocation6], 1
    %1452 = vsyncpa [#allocation4], 1

</llo_original>
